<compile_context>
chip_gen: v7x
topology: tpu7x:2x2x1
jax: 0.10.0
libtpu: 0.0.40
codegen_flags: <defaults>
</compile_context>

<pallas_src>
import functools
import math

import jax
import jax.numpy as jnp
from jax.experimental import pallas as pl
from jax.experimental.pallas import tpu as pltpu

_ROWS = 8  # full sublane height; batch is folded into lanes, not sublanes.


def _ode_fe_kernel(x_ref, y0i_ref, z0i_ref, w1e_ref, b1_ref, w2_ref, b2_ref,
                   w3_ref, b3_ref, w31_ref, c31_ref,
                   y_ref,
                   y_scr, z_scr, exc_scr, *,
                   inv_sr, chunk, unroll):
    """One grid step == `chunk` forward-Euler time steps.

    Carried quantities (registers inside the fori_loop, VMEM scratch across
    chunks), replicated over 8 sublanes so every matmul operand is full-height:
      y : (8, batch*state)   scaled state (sr * state), batch folded into lanes
      z : (8, batch*hidden)  first-layer pre-activation  y @ blockdiag(W1y)/sr
    Output row n (n >= 1) = y_n / sr; row 0 (= initial state) is written by the
    wrapper.  x_ref holds the excitation x[n-1] for the steps of this chunk.
    """
    c = pl.program_id(0)
    rows = y_scr.shape[0]
    bh = w2_ref.shape[0]          # batch * hidden
    bs = w3_ref.shape[1]          # batch * state

    @pl.when(c == 0)
    def _init():
        y_scr[...] = y0i_ref[...]
        z_scr[...] = z0i_ref[...]

    # Excitation + first-layer bias for every step of this chunk, computed with
    # a single matmul into VMEM scratch -- entirely off the serial chain.
    exc_scr[...] = (
        jnp.dot(x_ref[...], w1e_ref[...], preferred_element_type=jnp.float32)
        + b1_ref[...])

    # Hoist weight loads and bias broadcasts out of the serial time loop
    # (JAX does not CSE broadcast_in_dim).
    w2 = w2_ref[...]                                          # (bh, bh)
    w3 = w3_ref[...]                                          # (bh, bs)
    w31 = w31_ref[...]                                        # (bh, bh)
    b2 = jnp.broadcast_to(b2_ref[...], (rows, bh))
    b3 = jnp.broadcast_to(b3_ref[...], (rows, bs))
    c31 = jnp.broadcast_to(c31_ref[...], (rows, bh))
    inv = jnp.float32(inv_sr)

    def block_step(i, carry):
        y0, z0 = carry
        base = pl.multiple_of(i * unroll, unroll)
        e_blk = exc_scr[pl.ds(base, unroll), :]               # (unroll, bh)
        for u in range(unroll):                               # manual unroll
            e = e_blk[u:u + 1, :]                             # (1, bh)
            # --- serial dependence chain: 2 tanh + 2 MXU matmuls ---
            h1 = jnp.tanh(z0 + e)
            h2 = jnp.tanh(
                jnp.dot(h1, w2, preferred_element_type=jnp.float32) + b2)
            z0 = z0 + jnp.dot(h2, w31, preferred_element_type=jnp.float32) + c31
            # --- off-chain: actual state update and output row ---
            y0 = y0 + jnp.dot(h2, w3, preferred_element_type=jnp.float32) + b3
            y_ref[pl.ds(base + u, 1), :] = y0[0:1, :] * inv
        return y0, z0

    y_last, z_last = jax.lax.fori_loop(0, chunk // unroll, block_step,
                                       (y_scr[...], z_scr[...]))
    y_scr[...] = y_last                                       # carry to next chunk
    z_scr[...] = z_last


def _block_diag(w, n):
    """(a, b) -> (n*a, n*b) block-diagonal with n copies of w on the diagonal."""
    a, b = w.shape
    eye = jnp.eye(n, dtype=w.dtype)
    return (eye[:, None, :, None] * w[None, :, None, :]).reshape(n * a, n * b)


def scaled_odenet_fe(x, state0, params, *, sampling_rate, target_size,
                     chunk=4096, unroll=8):
    """x: (seq, batch, excitation_size) f32; state0: (batch, state_size) f32.

    Returns (seq, batch, target_size), matching ScaledODENetFE.forward.
    """
    seq, batch, exc_size = x.shape
    state_size = state0.shape[1]
    w1y, w1e, b1, w2, b2, w3, b3 = params
    hidden = w1y.shape[1]
    bs, bh, be = batch * state_size, batch * hidden, batch * exc_size
    sr = float(sampling_rate)
    f32 = jnp.float32
    hi = jax.lax.Precision.HIGHEST

    if seq == 1:
        return state0[None, :, :target_size].astype(f32)

    steps = seq - 1                                        # output rows 1..seq-1
    align = math.lcm(8, unroll)
    chunk = max(align, min(chunk, steps))
    chunk = ((chunk + align - 1) // align) * align
    num_chunks = pl.cdiv(steps, chunk)
    padded = num_chunks * chunk

    # Collapse the tiny trailing dims: time-major 2-D layouts only.  The
    # excitation used at output row n is x[n-1]; pad the tail so the time axis
    # divides evenly (padded steps produce rows that are sliced off).
    x2d = x[:-1].reshape(steps, be).astype(f32)
    if padded != steps:
        x2d = jnp.concatenate(
            [x2d, jnp.zeros((padded - steps, be), f32)], axis=0)

    # Block-diagonal ("batch folded into lanes") weights; 1/sr folded into W1y.
    w1s_blk = _block_diag(w1y.astype(f32) / f32(sr), batch)      # (bs, bh)
    w1e_blk = _block_diag(w1e.astype(f32), batch)                # (be, bh)
    w2_blk = _block_diag(w2.astype(f32), batch)                  # (bh, bh)
    w3_blk = _block_diag(w3.astype(f32), batch)                  # (bh, bs)
    b1_t = jnp.tile(b1.astype(f32), (1, batch))                  # (1, bh)
    b2_t = jnp.tile(b2.astype(f32), (1, batch))                  # (1, bh)
    b3_t = jnp.tile(b3.astype(f32), (1, batch))                  # (1, bs)
    w31 = jnp.dot(w3_blk, w1s_blk, precision=hi)                 # (bh, bh)
    c31 = jnp.dot(b3_t, w1s_blk, precision=hi)                   # (1, bh)

    # Initial carries (scaled state and its first-layer pre-activation),
    # replicated to 8 sublanes so every in-kernel matmul is full-height.
    y0_row = f32(sr) * state0.reshape(1, bs).astype(f32)
    z0_row = jnp.dot(y0_row, w1s_blk, precision=hi)
    y0_init = jnp.tile(y0_row, (_ROWS, 1))
    z0_init = jnp.tile(z0_row, (_ROWS, 1))

    kernel = functools.partial(_ode_fe_kernel, inv_sr=1.0 / sr,
                               chunk=chunk, unroll=unroll)

    ys2d = pl.pallas_call(
        kernel,
        out_shape=jax.ShapeDtypeStruct((padded, bs), f32),
        grid_spec=pltpu.PrefetchScalarGridSpec(
            num_scalar_prefetch=0,
            grid=(num_chunks,),
            in_specs=[
                pl.BlockSpec((chunk, be), lambda c: (c, 0)),   # excitation chunk
                pl.BlockSpec((_ROWS, bs), lambda c: (0, 0)),   # y0 init
                pl.BlockSpec((_ROWS, bh), lambda c: (0, 0)),   # z0 init
                pl.BlockSpec((be, bh), lambda c: (0, 0)),      # blockdiag W1e
                pl.BlockSpec((1, bh), lambda c: (0, 0)),       # tiled b1
                pl.BlockSpec((bh, bh), lambda c: (0, 0)),      # blockdiag W2
                pl.BlockSpec((1, bh), lambda c: (0, 0)),       # tiled b2
                pl.BlockSpec((bh, bs), lambda c: (0, 0)),      # blockdiag W3
                pl.BlockSpec((1, bs), lambda c: (0, 0)),       # tiled b3
                pl.BlockSpec((bh, bh), lambda c: (0, 0)),      # W3 @ W1y/sr
                pl.BlockSpec((1, bh), lambda c: (0, 0)),       # b3 @ W1y/sr
            ],
            out_specs=pl.BlockSpec((chunk, bs), lambda c: (c, 0)),
            scratch_shapes=[
                pltpu.VMEM((_ROWS, bs), f32),                  # carried y
                pltpu.VMEM((_ROWS, bh), f32),                  # carried z
                pltpu.VMEM((chunk, bh), f32),                  # per-chunk exc term
            ],
        ),
        compiler_params=pltpu.CompilerParams(
            dimension_semantics=("arbitrary",),    # sequential carry via scratch
            vmem_limit_bytes=32 * 1024 * 1024),
    )(x2d, y0_init, z0_init, w1e_blk, b1_t, w2_blk, b2_t, w3_blk, b3_t, w31, c31)

    ys = ys2d[:steps].reshape(steps, batch, state_size)
    y = jnp.concatenate([state0[None].astype(f32), ys], axis=0)  # row 0 = state0
    return y[:, :, :target_size]


def reference_jax(x, state0, params, *, sampling_rate, target_size):
    """Pure-JAX replica of ScaledODENetFE.forward for validation."""
    w1y, w1e, b1, w2, b2, w3, b3 = params
    sr = jnp.float32(sampling_rate)

    def mlp(y_scaled, exc):
        h1 = jnp.tanh(y_scaled @ w1y + exc @ w1e + b1)
        h2 = jnp.tanh(h1 @ w2 + b2)
        return h2 @ w3 + b3

    def step(y0, exc):
        y1 = y0 + mlp(y0 / sr, exc)
        return y1, y1 / sr

    y0 = sr * state0
    _, ys = jax.lax.scan(step, y0, x[:-1])
    y = jnp.concatenate([state0[None], ys], axis=0)
    return y[:, :, :target_size]


def make_params(key, exc_size, state_size, hidden):
    ks = jax.random.split(key, 4)
    w1y = 0.1 * jax.random.normal(ks[0], (state_size, hidden), jnp.float32)
    w1e = 0.1 * jax.random.normal(ks[1], (exc_size, hidden), jnp.float32)
    b1 = jnp.zeros((1, hidden), jnp.float32)
    w2 = 0.1 * jax.random.normal(ks[2], (hidden, hidden), jnp.float32)
    b2 = jnp.zeros((1, hidden), jnp.float32)
    w3 = 0.1 * jax.random.normal(ks[3], (hidden, state_size), jnp.float32)
    b3 = jnp.zeros((1, state_size), jnp.float32)
    return (w1y, w1e, b1, w2, b2, w3, b3)


if __name__ == "__main__":
    # Small but multi-chunk (4 chunks of 64 steps + padded tail) to exercise the
    # cross-chunk state carry, tail padding and the unrolled inner loop.
    SEQ, BATCH, EXC, STATE, HIDDEN = 250, 4, 1, 4, 32
    SAMPLING_RATE = 44100.0
    TARGET_SIZE = 2
    CHUNK, UNROLL = 64, 8

    key = jax.random.PRNGKey(0)
    kx, kp = jax.random.split(key)
    x = jax.random.normal(kx, (SEQ, BATCH, EXC), jnp.float32)
    state0 = jnp.zeros((BATCH, STATE), jnp.float32)  # prepare_state: zeros
    params = make_params(kp, EXC, STATE, HIDDEN)

    out = scaled_odenet_fe(x, state0, params, sampling_rate=SAMPLING_RATE,
                           target_size=TARGET_SIZE, chunk=CHUNK, unroll=UNROLL)
    out = jax.block_until_ready(out)
    assert out.shape == (SEQ, BATCH, TARGET_SIZE)

    ref = reference_jax(x, state0, params,
                        sampling_rate=SAMPLING_RATE, target_size=TARGET_SIZE)
    max_err = float(jnp.max(jnp.abs(out - ref)))
    assert max_err < 1e-4, f"mismatch vs reference: {max_err}"

    print("KERNEL_OK")
</pallas_src>

<mosaic_0001>
module attributes {stable_mosaic.version = 11 : i64} {
  func.func @_ode_fe_kernel(%arg0: i32, %arg1: memref<64x4xf32, #tpu.memory_space<vmem>>, %arg2: memref<8x16xf32, #tpu.memory_space<vmem>>, %arg3: memref<8x128xf32, #tpu.memory_space<vmem>>, %arg4: memref<4x128xf32, #tpu.memory_space<vmem>>, %arg5: memref<1x128xf32, #tpu.memory_space<vmem>>, %arg6: memref<128x128xf32, #tpu.memory_space<vmem>>, %arg7: memref<1x128xf32, #tpu.memory_space<vmem>>, %arg8: memref<128x16xf32, #tpu.memory_space<vmem>>, %arg9: memref<1x16xf32, #tpu.memory_space<vmem>>, %arg10: memref<128x128xf32, #tpu.memory_space<vmem>>, %arg11: memref<1x128xf32, #tpu.memory_space<vmem>>, %arg12: memref<64x16xf32, #tpu.memory_space<vmem>>, %arg13: memref<8x16xf32, #tpu.memory_space<vmem>>, %arg14: memref<8x128xf32, #tpu.memory_space<vmem>>, %arg15: memref<64x128xf32, #tpu.memory_space<vmem>>) attributes {dimension_semantics = [#tpu.dimension_semantics<arbitrary>], iteration_bounds = array<i64: 4>, scalar_prefetch = 0 : i64, scratch_operands = 3 : i64, tpu.core_type = #tpu.core_type<tc>, window_params = [{transform_indices = @transform_0, window_bounds = array<i64: 64, 4>}, {pipeline_mode = #tpu.pipeline_mode<synchronous>, transform_indices = @transform_1, window_bounds = array<i64: 8, 16>}, {pipeline_mode = #tpu.pipeline_mode<synchronous>, transform_indices = @transform_2, window_bounds = array<i64: 8, 128>}, {pipeline_mode = #tpu.pipeline_mode<synchronous>, transform_indices = @transform_3, window_bounds = array<i64: 4, 128>}, {pipeline_mode = #tpu.pipeline_mode<synchronous>, transform_indices = @transform_4, window_bounds = array<i64: 1, 128>}, {pipeline_mode = #tpu.pipeline_mode<synchronous>, transform_indices = @transform_5, window_bounds = array<i64: 128, 128>}, {pipeline_mode = #tpu.pipeline_mode<synchronous>, transform_indices = @transform_6, window_bounds = array<i64: 1, 128>}, {pipeline_mode = #tpu.pipeline_mode<synchronous>, transform_indices = @transform_7, window_bounds = array<i64: 128, 16>}, {pipeline_mode = #tpu.pipeline_mode<synchronous>, transform_indices = @transform_8, window_bounds = array<i64: 1, 16>}, {pipeline_mode = #tpu.pipeline_mode<synchronous>, transform_indices = @transform_9, window_bounds = array<i64: 128, 128>}, {pipeline_mode = #tpu.pipeline_mode<synchronous>, transform_indices = @transform_10, window_bounds = array<i64: 1, 128>}, {transform_indices = @transform_11, window_bounds = array<i64: 64, 16>}]} {
    %c0_i32 = arith.constant 0 : i32
    %0 = arith.cmpi eq, %arg0, %c0_i32 : i32
    %1 = arith.extui %0 : i1 to i32
    %c0_i32_0 = arith.constant 0 : i32
    %2 = arith.cmpi ne, %1, %c0_i32_0 : i32
    scf.if %2 {
      %c0_31 = arith.constant 0 : index
      %c0_32 = arith.constant 0 : index
      %28 = vector.load %arg2[%c0_31, %c0_32] : memref<8x16xf32, #tpu.memory_space<vmem>>, vector<8x16xf32>
      %c0_33 = arith.constant 0 : index
      %c0_34 = arith.constant 0 : index
      %29 = vector.load %arg13[%c0_33, %c0_34] : memref<8x16xf32, #tpu.memory_space<vmem>>, vector<8x16xf32>
      tpu.vector_store %arg13[%c0_33, %c0_34], %28 {strides = array<i32>} : memref<8x16xf32, #tpu.memory_space<vmem>>, vector<8x16xf32>,
      %c0_35 = arith.constant 0 : index
      %c0_36 = arith.constant 0 : index
      %30 = vector.load %arg3[%c0_35, %c0_36] : memref<8x128xf32, #tpu.memory_space<vmem>>, vector<8x128xf32>
      %c0_37 = arith.constant 0 : index
      %c0_38 = arith.constant 0 : index
      %31 = vector.load %arg14[%c0_37, %c0_38] : memref<8x128xf32, #tpu.memory_space<vmem>>, vector<8x128xf32>
      tpu.vector_store %arg14[%c0_37, %c0_38], %30 {strides = array<i32>} : memref<8x128xf32, #tpu.memory_space<vmem>>, vector<8x128xf32>,
    } else {
    }
    %c0 = arith.constant 0 : index
    %c0_1 = arith.constant 0 : index
    %3 = vector.load %arg1[%c0, %c0_1] : memref<64x4xf32, #tpu.memory_space<vmem>>, vector<64x4xf32>
    %c0_2 = arith.constant 0 : index
    %c0_3 = arith.constant 0 : index
    %4 = vector.load %arg4[%c0_2, %c0_3] : memref<4x128xf32, #tpu.memory_space<vmem>>, vector<4x128xf32>
    %cst = arith.constant dense<0.000000e+00> : vector<64x128xf32>
    %5 = tpu.matmul %3, %4, %cst {dimension_numbers = #tpu.dot_dimension_numbers<[1], [0], [0], [1], [0, 0, 1, 1], [], []>} : vector<64x4xf32>, vector<4x128xf32>, vector<64x128xf32> -> vector<64x128xf32>
    %c0_4 = arith.constant 0 : index
    %c0_5 = arith.constant 0 : index
    %6 = vector.load %arg5[%c0_4, %c0_5] : memref<1x128xf32, #tpu.memory_space<vmem>>, vector<1x128xf32>
    %7 = vector.broadcast %6 : vector<1x128xf32> to vector<64x128xf32>
    %8 = arith.addf %5, %7 : vector<64x128xf32>
    %c0_6 = arith.constant 0 : index
    %c0_7 = arith.constant 0 : index
    %9 = vector.load %arg15[%c0_6, %c0_7] : memref<64x128xf32, #tpu.memory_space<vmem>>, vector<64x128xf32>
    tpu.vector_store %arg15[%c0_6, %c0_7], %8 {strides = array<i32>} : memref<64x128xf32, #tpu.memory_space<vmem>>, vector<64x128xf32>,
    %c0_8 = arith.constant 0 : index
    %c0_9 = arith.constant 0 : index
    %10 = vector.load %arg6[%c0_8, %c0_9] : memref<128x128xf32, #tpu.memory_space<vmem>>, vector<128x128xf32>
    %c0_10 = arith.constant 0 : index
    %c0_11 = arith.constant 0 : index
    %11 = vector.load %arg8[%c0_10, %c0_11] : memref<128x16xf32, #tpu.memory_space<vmem>>, vector<128x16xf32>
    %c0_12 = arith.constant 0 : index
    %c0_13 = arith.constant 0 : index
    %12 = vector.load %arg10[%c0_12, %c0_13] : memref<128x128xf32, #tpu.memory_space<vmem>>, vector<128x128xf32>
    %c0_14 = arith.constant 0 : index
    %c0_15 = arith.constant 0 : index
    %13 = vector.load %arg7[%c0_14, %c0_15] : memref<1x128xf32, #tpu.memory_space<vmem>>, vector<1x128xf32>
    %14 = vector.shape_cast %13 : vector<1x128xf32> to vector<1x128xf32>
    %15 = vector.broadcast %14 : vector<1x128xf32> to vector<8x128xf32>
    %c0_16 = arith.constant 0 : index
    %c0_17 = arith.constant 0 : index
    %16 = vector.load %arg9[%c0_16, %c0_17] : memref<1x16xf32, #tpu.memory_space<vmem>>, vector<1x16xf32>
    %17 = vector.shape_cast %16 : vector<1x16xf32> to vector<1x16xf32>
    %18 = vector.broadcast %17 : vector<1x16xf32> to vector<8x16xf32>
    %c0_18 = arith.constant 0 : index
    %c0_19 = arith.constant 0 : index
    %19 = vector.load %arg11[%c0_18, %c0_19] : memref<1x128xf32, #tpu.memory_space<vmem>>, vector<1x128xf32>
    %20 = vector.shape_cast %19 : vector<1x128xf32> to vector<1x128xf32>
    %21 = vector.broadcast %20 : vector<1x128xf32> to vector<8x128xf32>
    %c0_20 = arith.constant 0 : index
    %c0_21 = arith.constant 0 : index
    %22 = vector.load %arg13[%c0_20, %c0_21] : memref<8x16xf32, #tpu.memory_space<vmem>>, vector<8x16xf32>
    %c0_22 = arith.constant 0 : index
    %c0_23 = arith.constant 0 : index
    %23 = vector.load %arg14[%c0_22, %c0_23] : memref<8x128xf32, #tpu.memory_space<vmem>>, vector<8x128xf32>
    %cst_24 = arith.constant 2.26757365E-5 : f32
    %c0_i32_25 = arith.constant 0 : i32
    %c8_i32 = arith.constant 8 : i32
    %24 = arith.addi %c0_i32_25, %c8_i32 : i32
    %c1_i32 = arith.constant 1 : i32
    %25:2 = scf.for %arg16 = %c0_i32_25 to %24 step %c1_i32 iter_args(%arg17 = %22, %arg18 = %23) -> (vector<8x16xf32>, vector<8x128xf32>)  : i32 {
      %c8_i32_31 = arith.constant 8 : i32
      %28 = arith.muli %arg16, %c8_i32_31 : i32
      %29 = tpu.assume_multiple %28, 8 : i32
      %30 = arith.index_cast %29 : i32 to index
      %c0_32 = arith.constant 0 : index
      %31 = vector.load %arg15[%30, %c0_32] : memref<64x128xf32, #tpu.memory_space<vmem>>, vector<8x128xf32>
      %32 = vector.extract_strided_slice %31 {offsets = [0, 0], sizes = [1, 128], strides = [1, 1]} : vector<8x128xf32> to vector<1x128xf32>
      %33 = vector.broadcast %32 : vector<1x128xf32> to vector<8x128xf32>
      %34 = arith.addf %arg18, %33 : vector<8x128xf32>
      %35 = math.tanh %34 : vector<8x128xf32>
      %cst_33 = arith.constant dense<0.000000e+00> : vector<8x128xf32>
      %36 = tpu.matmul %35, %10, %cst_33 {dimension_numbers = #tpu.dot_dimension_numbers<[1], [0], [0], [1], [0, 0, 1, 1], [], []>} : vector<8x128xf32>, vector<128x128xf32>, vector<8x128xf32> -> vector<8x128xf32>
      %37 = arith.addf %36, %15 : vector<8x128xf32>
      %38 = math.tanh %37 : vector<8x128xf32>
      %cst_34 = arith.constant dense<0.000000e+00> : vector<8x128xf32>
      %39 = tpu.matmul %38, %12, %cst_34 {dimension_numbers = #tpu.dot_dimension_numbers<[1], [0], [0], [1], [0, 0, 1, 1], [], []>} : vector<8x128xf32>, vector<128x128xf32>, vector<8x128xf32> -> vector<8x128xf32>
      %40 = arith.addf %arg18, %39 : vector<8x128xf32>
      %41 = arith.addf %40, %21 : vector<8x128xf32>
      %cst_35 = arith.constant dense<0.000000e+00> : vector<8x16xf32>
      %42 = tpu.matmul %38, %11, %cst_35 {dimension_numbers = #tpu.dot_dimension_numbers<[1], [0], [0], [1], [0, 0, 1, 1], [], []>} : vector<8x128xf32>, vector<128x16xf32>, vector<8x16xf32> -> vector<8x16xf32>
      %43 = arith.addf %arg17, %42 : vector<8x16xf32>
      %44 = arith.addf %43, %18 : vector<8x16xf32>
      %45 = vector.extract_strided_slice %44 {offsets = [0, 0], sizes = [1, 16], strides = [1, 1]} : vector<8x16xf32> to vector<1x16xf32>
      %46 = vector.broadcast %cst_24 : f32 to vector<1x16xf32>
      %47 = arith.mulf %45, %46 : vector<1x16xf32>
      %c0_i32_36 = arith.constant 0 : i32
      %48 = arith.addi %29, %c0_i32_36 : i32
      %49 = arith.index_cast %48 : i32 to index
      %c0_37 = arith.constant 0 : index
      %50 = vector.load %arg12[%49, %c0_37] : memref<64x16xf32, #tpu.memory_space<vmem>>, vector<1x16xf32>
      tpu.vector_store %arg12[%49, %c0_37], %47 {strides = array<i32>} : memref<64x16xf32, #tpu.memory_space<vmem>>, vector<1x16xf32>,
      %51 = vector.extract_strided_slice %31 {offsets = [1, 0], sizes = [1, 128], strides = [1, 1]} : vector<8x128xf32> to vector<1x128xf32>
      %52 = vector.broadcast %51 : vector<1x128xf32> to vector<8x128xf32>
      %53 = arith.addf %41, %52 : vector<8x128xf32>
      %54 = math.tanh %53 : vector<8x128xf32>
      %cst_38 = arith.constant dense<0.000000e+00> : vector<8x128xf32>
      %55 = tpu.matmul %54, %10, %cst_38 {dimension_numbers = #tpu.dot_dimension_numbers<[1], [0], [0], [1], [0, 0, 1, 1], [], []>} : vector<8x128xf32>, vector<128x128xf32>, vector<8x128xf32> -> vector<8x128xf32>
      %56 = arith.addf %55, %15 : vector<8x128xf32>
      %57 = math.tanh %56 : vector<8x128xf32>
      %cst_39 = arith.constant dense<0.000000e+00> : vector<8x128xf32>
      %58 = tpu.matmul %57, %12, %cst_39 {dimension_numbers = #tpu.dot_dimension_numbers<[1], [0], [0], [1], [0, 0, 1, 1], [], []>} : vector<8x128xf32>, vector<128x128xf32>, vector<8x128xf32> -> vector<8x128xf32>
      %59 = arith.addf %41, %58 : vector<8x128xf32>
      %60 = arith.addf %59, %21 : vector<8x128xf32>
      %cst_40 = arith.constant dense<0.000000e+00> : vector<8x16xf32>
      %61 = tpu.matmul %57, %11, %cst_40 {dimension_numbers = #tpu.dot_dimension_numbers<[1], [0], [0], [1], [0, 0, 1, 1], [], []>} : vector<8x128xf32>, vector<128x16xf32>, vector<8x16xf32> -> vector<8x16xf32>
      %62 = arith.addf %44, %61 : vector<8x16xf32>
      %63 = arith.addf %62, %18 : vector<8x16xf32>
      %64 = vector.extract_strided_slice %63 {offsets = [0, 0], sizes = [1, 16], strides = [1, 1]} : vector<8x16xf32> to vector<1x16xf32>
      %65 = vector.broadcast %cst_24 : f32 to vector<1x16xf32>
      %66 = arith.mulf %64, %65 : vector<1x16xf32>
      %c1_i32_41 = arith.constant 1 : i32
      %67 = arith.addi %29, %c1_i32_41 : i32
      %68 = arith.index_cast %67 : i32 to index
      %c0_42 = arith.constant 0 : index
      %69 = vector.load %arg12[%68, %c0_42] : memref<64x16xf32, #tpu.memory_space<vmem>>, vector<1x16xf32>
      tpu.vector_store %arg12[%68, %c0_42], %66 {strides = array<i32>} : memref<64x16xf32, #tpu.memory_space<vmem>>, vector<1x16xf32>,
      %70 = vector.extract_strided_slice %31 {offsets = [2, 0], sizes = [1, 128], strides = [1, 1]} : vector<8x128xf32> to vector<1x128xf32>
      %71 = vector.broadcast %70 : vector<1x128xf32> to vector<8x128xf32>
      %72 = arith.addf %60, %71 : vector<8x128xf32>
      %73 = math.tanh %72 : vector<8x128xf32>
      %cst_43 = arith.constant dense<0.000000e+00> : vector<8x128xf32>
      %74 = tpu.matmul %73, %10, %cst_43 {dimension_numbers = #tpu.dot_dimension_numbers<[1], [0], [0], [1], [0, 0, 1, 1], [], []>} : vector<8x128xf32>, vector<128x128xf32>, vector<8x128xf32> -> vector<8x128xf32>
      %75 = arith.addf %74, %15 : vector<8x128xf32>
      %76 = math.tanh %75 : vector<8x128xf32>
      %cst_44 = arith.constant dense<0.000000e+00> : vector<8x128xf32>
      %77 = tpu.matmul %76, %12, %cst_44 {dimension_numbers = #tpu.dot_dimension_numbers<[1], [0], [0], [1], [0, 0, 1, 1], [], []>} : vector<8x128xf32>, vector<128x128xf32>, vector<8x128xf32> -> vector<8x128xf32>
      %78 = arith.addf %60, %77 : vector<8x128xf32>
      %79 = arith.addf %78, %21 : vector<8x128xf32>
      %cst_45 = arith.constant dense<0.000000e+00> : vector<8x16xf32>
      %80 = tpu.matmul %76, %11, %cst_45 {dimension_numbers = #tpu.dot_dimension_numbers<[1], [0], [0], [1], [0, 0, 1, 1], [], []>} : vector<8x128xf32>, vector<128x16xf32>, vector<8x16xf32> -> vector<8x16xf32>
      %81 = arith.addf %63, %80 : vector<8x16xf32>
      %82 = arith.addf %81, %18 : vector<8x16xf32>
      %83 = vector.extract_strided_slice %82 {offsets = [0, 0], sizes = [1, 16], strides = [1, 1]} : vector<8x16xf32> to vector<1x16xf32>
      %84 = vector.broadcast %cst_24 : f32 to vector<1x16xf32>
      %85 = arith.mulf %83, %84 : vector<1x16xf32>
      %c2_i32 = arith.constant 2 : i32
      %86 = arith.addi %29, %c2_i32 : i32
      %87 = arith.index_cast %86 : i32 to index
      %c0_46 = arith.constant 0 : index
      %88 = vector.load %arg12[%87, %c0_46] : memref<64x16xf32, #tpu.memory_space<vmem>>, vector<1x16xf32>
      tpu.vector_store %arg12[%87, %c0_46], %85 {strides = array<i32>} : memref<64x16xf32, #tpu.memory_space<vmem>>, vector<1x16xf32>,
      %89 = vector.extract_strided_slice %31 {offsets = [3, 0], sizes = [1, 128], strides = [1, 1]} : vector<8x128xf32> to vector<1x128xf32>
      %90 = vector.broadcast %89 : vector<1x128xf32> to vector<8x128xf32>
      %91 = arith.addf %79, %90 : vector<8x128xf32>
      %92 = math.tanh %91 : vector<8x128xf32>
      %cst_47 = arith.constant dense<0.000000e+00> : vector<8x128xf32>
      %93 = tpu.matmul %92, %10, %cst_47 {dimension_numbers = #tpu.dot_dimension_numbers<[1], [0], [0], [1], [0, 0, 1, 1], [], []>} : vector<8x128xf32>, vector<128x128xf32>, vector<8x128xf32> -> vector<8x128xf32>
      %94 = arith.addf %93, %15 : vector<8x128xf32>
      %95 = math.tanh %94 : vector<8x128xf32>
      %cst_48 = arith.constant dense<0.000000e+00> : vector<8x128xf32>
      %96 = tpu.matmul %95, %12, %cst_48 {dimension_numbers = #tpu.dot_dimension_numbers<[1], [0], [0], [1], [0, 0, 1, 1], [], []>} : vector<8x128xf32>, vector<128x128xf32>, vector<8x128xf32> -> vector<8x128xf32>
      %97 = arith.addf %79, %96 : vector<8x128xf32>
      %98 = arith.addf %97, %21 : vector<8x128xf32>
      %cst_49 = arith.constant dense<0.000000e+00> : vector<8x16xf32>
      %99 = tpu.matmul %95, %11, %cst_49 {dimension_numbers = #tpu.dot_dimension_numbers<[1], [0], [0], [1], [0, 0, 1, 1], [], []>} : vector<8x128xf32>, vector<128x16xf32>, vector<8x16xf32> -> vector<8x16xf32>
      %100 = arith.addf %82, %99 : vector<8x16xf32>
      %101 = arith.addf %100, %18 : vector<8x16xf32>
      %102 = vector.extract_strided_slice %101 {offsets = [0, 0], sizes = [1, 16], strides = [1, 1]} : vector<8x16xf32> to vector<1x16xf32>
      %103 = vector.broadcast %cst_24 : f32 to vector<1x16xf32>
      %104 = arith.mulf %102, %103 : vector<1x16xf32>
      %c3_i32 = arith.constant 3 : i32
      %105 = arith.addi %29, %c3_i32 : i32
      %106 = arith.index_cast %105 : i32 to index
      %c0_50 = arith.constant 0 : index
      %107 = vector.load %arg12[%106, %c0_50] : memref<64x16xf32, #tpu.memory_space<vmem>>, vector<1x16xf32>
      tpu.vector_store %arg12[%106, %c0_50], %104 {strides = array<i32>} : memref<64x16xf32, #tpu.memory_space<vmem>>, vector<1x16xf32>,
      %108 = vector.extract_strided_slice %31 {offsets = [4, 0], sizes = [1, 128], strides = [1, 1]} : vector<8x128xf32> to vector<1x128xf32>
      %109 = vector.broadcast %108 : vector<1x128xf32> to vector<8x128xf32>
      %110 = arith.addf %98, %109 : vector<8x128xf32>
      %111 = math.tanh %110 : vector<8x128xf32>
      %cst_51 = arith.constant dense<0.000000e+00> : vector<8x128xf32>
      %112 = tpu.matmul %111, %10, %cst_51 {dimension_numbers = #tpu.dot_dimension_numbers<[1], [0], [0], [1], [0, 0, 1, 1], [], []>} : vector<8x128xf32>, vector<128x128xf32>, vector<8x128xf32> -> vector<8x128xf32>
      %113 = arith.addf %112, %15 : vector<8x128xf32>
      %114 = math.tanh %113 : vector<8x128xf32>
      %cst_52 = arith.constant dense<0.000000e+00> : vector<8x128xf32>
      %115 = tpu.matmul %114, %12, %cst_52 {dimension_numbers = #tpu.dot_dimension_numbers<[1], [0], [0], [1], [0, 0, 1, 1], [], []>} : vector<8x128xf32>, vector<128x128xf32>, vector<8x128xf32> -> vector<8x128xf32>
      %116 = arith.addf %98, %115 : vector<8x128xf32>
      %117 = arith.addf %116, %21 : vector<8x128xf32>
      %cst_53 = arith.constant dense<0.000000e+00> : vector<8x16xf32>
      %118 = tpu.matmul %114, %11, %cst_53 {dimension_numbers = #tpu.dot_dimension_numbers<[1], [0], [0], [1], [0, 0, 1, 1], [], []>} : vector<8x128xf32>, vector<128x16xf32>, vector<8x16xf32> -> vector<8x16xf32>
      %119 = arith.addf %101, %118 : vector<8x16xf32>
      %120 = arith.addf %119, %18 : vector<8x16xf32>
      %121 = vector.extract_strided_slice %120 {offsets = [0, 0], sizes = [1, 16], strides = [1, 1]} : vector<8x16xf32> to vector<1x16xf32>
      %122 = vector.broadcast %cst_24 : f32 to vector<1x16xf32>
      %123 = arith.mulf %121, %122 : vector<1x16xf32>
      %c4_i32 = arith.constant 4 : i32
      %124 = arith.addi %29, %c4_i32 : i32
      %125 = arith.index_cast %124 : i32 to index
      %c0_54 = arith.constant 0 : index
      %126 = vector.load %arg12[%125, %c0_54] : memref<64x16xf32, #tpu.memory_space<vmem>>, vector<1x16xf32>
      tpu.vector_store %arg12[%125, %c0_54], %123 {strides = array<i32>} : memref<64x16xf32, #tpu.memory_space<vmem>>, vector<1x16xf32>,
      %127 = vector.extract_strided_slice %31 {offsets = [5, 0], sizes = [1, 128], strides = [1, 1]} : vector<8x128xf32> to vector<1x128xf32>
      %128 = vector.broadcast %127 : vector<1x128xf32> to vector<8x128xf32>
      %129 = arith.addf %117, %128 : vector<8x128xf32>
      %130 = math.tanh %129 : vector<8x128xf32>
      %cst_55 = arith.constant dense<0.000000e+00> : vector<8x128xf32>
      %131 = tpu.matmul %130, %10, %cst_55 {dimension_numbers = #tpu.dot_dimension_numbers<[1], [0], [0], [1], [0, 0, 1, 1], [], []>} : vector<8x128xf32>, vector<128x128xf32>, vector<8x128xf32> -> vector<8x128xf32>
      %132 = arith.addf %131, %15 : vector<8x128xf32>
      %133 = math.tanh %132 : vector<8x128xf32>
      %cst_56 = arith.constant dense<0.000000e+00> : vector<8x128xf32>
      %134 = tpu.matmul %133, %12, %cst_56 {dimension_numbers = #tpu.dot_dimension_numbers<[1], [0], [0], [1], [0, 0, 1, 1], [], []>} : vector<8x128xf32>, vector<128x128xf32>, vector<8x128xf32> -> vector<8x128xf32>
      %135 = arith.addf %117, %134 : vector<8x128xf32>
      %136 = arith.addf %135, %21 : vector<8x128xf32>
      %cst_57 = arith.constant dense<0.000000e+00> : vector<8x16xf32>
      %137 = tpu.matmul %133, %11, %cst_57 {dimension_numbers = #tpu.dot_dimension_numbers<[1], [0], [0], [1], [0, 0, 1, 1], [], []>} : vector<8x128xf32>, vector<128x16xf32>, vector<8x16xf32> -> vector<8x16xf32>
      %138 = arith.addf %120, %137 : vector<8x16xf32>
      %139 = arith.addf %138, %18 : vector<8x16xf32>
      %140 = vector.extract_strided_slice %139 {offsets = [0, 0], sizes = [1, 16], strides = [1, 1]} : vector<8x16xf32> to vector<1x16xf32>
      %141 = vector.broadcast %cst_24 : f32 to vector<1x16xf32>
      %142 = arith.mulf %140, %141 : vector<1x16xf32>
      %c5_i32 = arith.constant 5 : i32
      %143 = arith.addi %29, %c5_i32 : i32
      %144 = arith.index_cast %143 : i32 to index
      %c0_58 = arith.constant 0 : index
      %145 = vector.load %arg12[%144, %c0_58] : memref<64x16xf32, #tpu.memory_space<vmem>>, vector<1x16xf32>
      tpu.vector_store %arg12[%144, %c0_58], %142 {strides = array<i32>} : memref<64x16xf32, #tpu.memory_space<vmem>>, vector<1x16xf32>,
      %146 = vector.extract_strided_slice %31 {offsets = [6, 0], sizes = [1, 128], strides = [1, 1]} : vector<8x128xf32> to vector<1x128xf32>
      %147 = vector.broadcast %146 : vector<1x128xf32> to vector<8x128xf32>
      %148 = arith.addf %136, %147 : vector<8x128xf32>
      %149 = math.tanh %148 : vector<8x128xf32>
      %cst_59 = arith.constant dense<0.000000e+00> : vector<8x128xf32>
      %150 = tpu.matmul %149, %10, %cst_59 {dimension_numbers = #tpu.dot_dimension_numbers<[1], [0], [0], [1], [0, 0, 1, 1], [], []>} : vector<8x128xf32>, vector<128x128xf32>, vector<8x128xf32> -> vector<8x128xf32>
      %151 = arith.addf %150, %15 : vector<8x128xf32>
      %152 = math.tanh %151 : vector<8x128xf32>
      %cst_60 = arith.constant dense<0.000000e+00> : vector<8x128xf32>
      %153 = tpu.matmul %152, %12, %cst_60 {dimension_numbers = #tpu.dot_dimension_numbers<[1], [0], [0], [1], [0, 0, 1, 1], [], []>} : vector<8x128xf32>, vector<128x128xf32>, vector<8x128xf32> -> vector<8x128xf32>
      %154 = arith.addf %136, %153 : vector<8x128xf32>
      %155 = arith.addf %154, %21 : vector<8x128xf32>
      %cst_61 = arith.constant dense<0.000000e+00> : vector<8x16xf32>
      %156 = tpu.matmul %152, %11, %cst_61 {dimension_numbers = #tpu.dot_dimension_numbers<[1], [0], [0], [1], [0, 0, 1, 1], [], []>} : vector<8x128xf32>, vector<128x16xf32>, vector<8x16xf32> -> vector<8x16xf32>
      %157 = arith.addf %139, %156 : vector<8x16xf32>
      %158 = arith.addf %157, %18 : vector<8x16xf32>
      %159 = vector.extract_strided_slice %158 {offsets = [0, 0], sizes = [1, 16], strides = [1, 1]} : vector<8x16xf32> to vector<1x16xf32>
      %160 = vector.broadcast %cst_24 : f32 to vector<1x16xf32>
      %161 = arith.mulf %159, %160 : vector<1x16xf32>
      %c6_i32 = arith.constant 6 : i32
      %162 = arith.addi %29, %c6_i32 : i32
      %163 = arith.index_cast %162 : i32 to index
      %c0_62 = arith.constant 0 : index
      %164 = vector.load %arg12[%163, %c0_62] : memref<64x16xf32, #tpu.memory_space<vmem>>, vector<1x16xf32>
      tpu.vector_store %arg12[%163, %c0_62], %161 {strides = array<i32>} : memref<64x16xf32, #tpu.memory_space<vmem>>, vector<1x16xf32>,
      %165 = vector.extract_strided_slice %31 {offsets = [7, 0], sizes = [1, 128], strides = [1, 1]} : vector<8x128xf32> to vector<1x128xf32>
      %166 = vector.broadcast %165 : vector<1x128xf32> to vector<8x128xf32>
      %167 = arith.addf %155, %166 : vector<8x128xf32>
      %168 = math.tanh %167 : vector<8x128xf32>
      %cst_63 = arith.constant dense<0.000000e+00> : vector<8x128xf32>
      %169 = tpu.matmul %168, %10, %cst_63 {dimension_numbers = #tpu.dot_dimension_numbers<[1], [0], [0], [1], [0, 0, 1, 1], [], []>} : vector<8x128xf32>, vector<128x128xf32>, vector<8x128xf32> -> vector<8x128xf32>
      %170 = arith.addf %169, %15 : vector<8x128xf32>
      %171 = math.tanh %170 : vector<8x128xf32>
      %cst_64 = arith.constant dense<0.000000e+00> : vector<8x128xf32>
      %172 = tpu.matmul %171, %12, %cst_64 {dimension_numbers = #tpu.dot_dimension_numbers<[1], [0], [0], [1], [0, 0, 1, 1], [], []>} : vector<8x128xf32>, vector<128x128xf32>, vector<8x128xf32> -> vector<8x128xf32>
      %173 = arith.addf %155, %172 : vector<8x128xf32>
      %174 = arith.addf %173, %21 : vector<8x128xf32>
      %cst_65 = arith.constant dense<0.000000e+00> : vector<8x16xf32>
      %175 = tpu.matmul %171, %11, %cst_65 {dimension_numbers = #tpu.dot_dimension_numbers<[1], [0], [0], [1], [0, 0, 1, 1], [], []>} : vector<8x128xf32>, vector<128x16xf32>, vector<8x16xf32> -> vector<8x16xf32>
      %176 = arith.addf %158, %175 : vector<8x16xf32>
      %177 = arith.addf %176, %18 : vector<8x16xf32>
      %178 = vector.extract_strided_slice %177 {offsets = [0, 0], sizes = [1, 16], strides = [1, 1]} : vector<8x16xf32> to vector<1x16xf32>
      %179 = vector.broadcast %cst_24 : f32 to vector<1x16xf32>
      %180 = arith.mulf %178, %179 : vector<1x16xf32>
      %c7_i32 = arith.constant 7 : i32
      %181 = arith.addi %29, %c7_i32 : i32
      %182 = arith.index_cast %181 : i32 to index
      %c0_66 = arith.constant 0 : index
      %183 = vector.load %arg12[%182, %c0_66] : memref<64x16xf32, #tpu.memory_space<vmem>>, vector<1x16xf32>
      tpu.vector_store %arg12[%182, %c0_66], %180 {strides = array<i32>} : memref<64x16xf32, #tpu.memory_space<vmem>>, vector<1x16xf32>,
      scf.yield %177, %174 : vector<8x16xf32>, vector<8x128xf32>
    }
    %c8_i32_26 = arith.constant 8 : i32
    %c0_27 = arith.constant 0 : index
    %c0_28 = arith.constant 0 : index
    %26 = vector.load %arg13[%c0_27, %c0_28] : memref<8x16xf32, #tpu.memory_space<vmem>>, vector<8x16xf32>
    tpu.vector_store %arg13[%c0_27, %c0_28], %25#0 {strides = array<i32>} : memref<8x16xf32, #tpu.memory_space<vmem>>, vector<8x16xf32>,
    %c0_29 = arith.constant 0 : index
    %c0_30 = arith.constant 0 : index
    %27 = vector.load %arg14[%c0_29, %c0_30] : memref<8x128xf32, #tpu.memory_space<vmem>>, vector<8x128xf32>
    tpu.vector_store %arg14[%c0_29, %c0_30], %25#1 {strides = array<i32>} : memref<8x128xf32, #tpu.memory_space<vmem>>, vector<8x128xf32>,
    return
  }
  func.func @transform_0(%arg0: i32) -> (i32, i32) {
    %c0_i32 = arith.constant 0 : i32
    %c0_i32_0 = arith.constant 0 : i32
    return %arg0, %c0_i32 : i32, i32
  }
  func.func @transform_1(%arg0: i32) -> (i32, i32) {
    %c0_i32 = arith.constant 0 : i32
    %c0_i32_0 = arith.constant 0 : i32
    %c0_i32_1 = arith.constant 0 : i32
    return %c0_i32, %c0_i32_0 : i32, i32
  }
  func.func @transform_2(%arg0: i32) -> (i32, i32) {
    %c0_i32 = arith.constant 0 : i32
    %c0_i32_0 = arith.constant 0 : i32
    %c0_i32_1 = arith.constant 0 : i32
    return %c0_i32, %c0_i32_0 : i32, i32
  }
  func.func @transform_3(%arg0: i32) -> (i32, i32) {
    %c0_i32 = arith.constant 0 : i32
    %c0_i32_0 = arith.constant 0 : i32
    %c0_i32_1 = arith.constant 0 : i32
    return %c0_i32, %c0_i32_0 : i32, i32
  }
  func.func @transform_4(%arg0: i32) -> (i32, i32) {
    %c0_i32 = arith.constant 0 : i32
    %c0_i32_0 = arith.constant 0 : i32
    %c0_i32_1 = arith.constant 0 : i32
    return %c0_i32, %c0_i32_0 : i32, i32
  }
  func.func @transform_5(%arg0: i32) -> (i32, i32) {
    %c0_i32 = arith.constant 0 : i32
    %c0_i32_0 = arith.constant 0 : i32
    %c0_i32_1 = arith.constant 0 : i32
    return %c0_i32, %c0_i32_0 : i32, i32
  }
  func.func @transform_6(%arg0: i32) -> (i32, i32) {
    %c0_i32 = arith.constant 0 : i32
    %c0_i32_0 = arith.constant 0 : i32
    %c0_i32_1 = arith.constant 0 : i32
    return %c0_i32, %c0_i32_0 : i32, i32
  }
  func.func @transform_7(%arg0: i32) -> (i32, i32) {
    %c0_i32 = arith.constant 0 : i32
    %c0_i32_0 = arith.constant 0 : i32
    %c0_i32_1 = arith.constant 0 : i32
    return %c0_i32, %c0_i32_0 : i32, i32
  }
  func.func @transform_8(%arg0: i32) -> (i32, i32) {
    %c0_i32 = arith.constant 0 : i32
    %c0_i32_0 = arith.constant 0 : i32
    %c0_i32_1 = arith.constant 0 : i32
    return %c0_i32, %c0_i32_0 : i32, i32
  }
  func.func @transform_9(%arg0: i32) -> (i32, i32) {
    %c0_i32 = arith.constant 0 : i32
    %c0_i32_0 = arith.constant 0 : i32
    %c0_i32_1 = arith.constant 0 : i32
    return %c0_i32, %c0_i32_0 : i32, i32
  }
  func.func @transform_10(%arg0: i32) -> (i32, i32) {
    %c0_i32 = arith.constant 0 : i32
    %c0_i32_0 = arith.constant 0 : i32
    %c0_i32_1 = arith.constant 0 : i32
    return %c0_i32, %c0_i32_0 : i32, i32
  }
  func.func @transform_11(%arg0: i32) -> (i32, i32) {
    %c0_i32 = arith.constant 0 : i32
    %c0_i32_0 = arith.constant 0 : i32
    return %arg0, %c0_i32 : i32, i32
  }
}

</mosaic_0001>

<llo_original>
// kernel: tpu_custom_call.1
$region0: #{tpu_custom_call.1}
  #allocation0 [shape = 'u32[]', space=smem, size = 0x4, offset = 0x4, fixed_abs, tag = 'smem constant byte address 0x4 - core index']
  #allocation1 [shape = 'u32[144,128]{1,0:T(1,128)}', space=vmem, size = 0x12000, scoped, tag = 'internal scratch']
  #allocation2 [shape = 'f32[8,16]{1,0:T(8,128)}', space=vmem, size = 0x1000, scoped, tag = 'scratch operand']
  #allocation3 [shape = 'f32[8,128]{1,0:T(8,128)}', space=vmem, size = 0x1000, scoped, tag = 'scratch operand']
  #allocation4 [shape = 'f32[64,128]{1,0:T(8,128)}', space=vmem, size = 0x8000, scoped, tag = 'scratch operand']
  %s0 = inlined_call_operand.vmem [shape: f32[256,4], index: 0, kind: input, shape index: {}]
  %s1 = inlined_call_operand.vmem [shape: f32[8,16], index: 1, kind: input, shape index: {}]
  %s2 = inlined_call_operand.vmem [shape: f32[8,128], index: 2, kind: input, shape index: {}]
  %s3 = inlined_call_operand.vmem [shape: f32[4,128], index: 3, kind: input, shape index: {}]
  %s4 = inlined_call_operand.vmem [shape: f32[1,128], index: 4, kind: input, shape index: {}]
  %s5 = inlined_call_operand.vmem [shape: f32[128,128], index: 5, kind: input, shape index: {}]
  %s6 = inlined_call_operand.vmem [shape: f32[1,128], index: 6, kind: input, shape index: {}]
  %s7 = inlined_call_operand.vmem [shape: f32[128,16], index: 7, kind: input, shape index: {}]
  %s8 = inlined_call_operand.vmem [shape: f32[1,16], index: 8, kind: input, shape index: {}]
  %s9 = inlined_call_operand.vmem [shape: f32[128,128], index: 9, kind: input, shape index: {}]
  %s10 = inlined_call_operand.vmem [shape: f32[1,128], index: 10, kind: input, shape index: {}]
  %s11 = inlined_call_operand.vmem [shape: f32[256,16], index: 11, kind: output, shape index: {}]
  %s12 = sld [smem:[#allocation0]]
  $region88: #{tpu_custom_call.1} parent=0
    _
  %s14 = ssub.s32 1, %s12
  %s15 = scalar_select 0, %s14, %s12
  loop: start=0, step=1, limit=6
  $region2: #{tpu_custom_call.1} parent=0 // loop_pre_header
    _
  $region3: #{tpu_custom_call.1} parent=0 // loop_header
    %s17 = sphi 0, %s21
    %p18 = scmp.ge.s32.totalorder %s17, 6
    %s27 = sphi 0, %s29
    %s30 = sphi 0, %s27
    %s31 = sphi 0, %s30
    %s47 = sphi 0, %s31
    %s51 = sphi 0, %s51
    %s53 = sphi 0, %s51
    %s54 = sphi 0, %s53
    %s68 = sphi 0, %s54
    %s72 = sphi 0, %s72
    %s74 = sphi 0, %s72
    %s75 = sphi 0, %s74
    %s89 = sphi 0, %s75
    %s93 = sphi 0, %s93
    %s95 = sphi 0, %s93
    %s96 = sphi 0, %s95
    %s110 = sphi 0, %s96
    %s114 = sphi 0, %s114
    %s116 = sphi 0, %s114
    %s117 = sphi 0, %s116
    %s131 = sphi 0, %s117
    %s135 = sphi 0, %s135
    %s137 = sphi 0, %s135
    %s138 = sphi 0, %s137
    %s152 = sphi 0, %s138
    %s156 = sphi 0, %s156
    %s158 = sphi 0, %s156
    %s159 = sphi 0, %s158
    %s173 = sphi 0, %s159
    %s177 = sphi 0, %s177
    %s179 = sphi 0, %s177
    %s180 = sphi 0, %s179
    %s194 = sphi 0, %s180
    %s198 = sphi 0, %s198
    %s200 = sphi 0, %s198
    %s201 = sphi 0, %s200
    %s215 = sphi 0, %s201
    %s219 = sphi 0, %s219
    %s221 = sphi 0, %s219
    %s222 = sphi 0, %s221
    %s236 = sphi 0, %s222
    %s240 = sphi 0, %s240
    %s242 = sphi 0, %s240
    %s243 = sphi 0, %s242
    %s257 = sphi 0, %s243
    %s263 = sphi 0, %s265
    %s266 = sphi 0, %s263
    %s267 = sphi 0, %s266
    %s283 = sphi 0, %s267
  $region4: #{tpu_custom_call.1} parent=0 // loop_header_branch
    %20 = sbr.rel (%p18) target = $region8
  $region5: #{tpu_custom_call.1} parent=0 // loop_body
    %s22 = ssub.s32 %s17, 1
    %s23 = ssub.s32 %s17, 2
    %s24 = sadd.s32 %s17, 1
    %s25 = ssub.s32 %s17, %s24
    %p26 = scmp.eq.s32.totalorder %s25, 0
    %s28 = sadd.s32 %s27, 1
    %s29 = scalar_select %p26, %s27, %s28
    %p32 = pneg %p26
    %p33 = scmp.eq.s32.totalorder %s17, 3
    %p34 = por %p32, %p33
    %p35 = scmp.ne.s32.totalorder %s27, %s30
    %p36 = scmp.eq.s32.totalorder %s17, 0
    %p37 = por %p35, %p36
    %p38 = scmp.ne.s32.totalorder %s27, %s30
    %p39 = scmp.eq.s32.totalorder %s22, 3
    %p40 = por %p38, %p39
    %p41 = scmp.ne.s32.totalorder %s30, %s31
    %p42 = scmp.eq.s32.totalorder %s22, 0
    %p43 = por %p41, %p42
    %p44 = scmp.ne.s32.totalorder %s30, %s31
    %p45 = scmp.eq.s32.totalorder %s23, 3
    %p46 = por %p44, %p45
    %p48 = scmp.ne.s32.totalorder %s31, %s47
    %p49 = scmp.eq.s32.totalorder %s23, 0
    %p50 = por %p48, %p49
    %s52 = sadd.s32 %s51, 1
    %p55 = scmp.eq.s32.totalorder %s17, 3
    %p56 = scmp.ne.s32.totalorder %s51, %s53
    %p57 = scmp.eq.s32.totalorder %s17, 0
    %p58 = por %p56, %p57
    %p59 = scmp.ne.s32.totalorder %s51, %s53
    %p60 = scmp.eq.s32.totalorder %s22, 3
    %p61 = por %p59, %p60
    %p62 = scmp.ne.s32.totalorder %s53, %s54
    %p63 = scmp.eq.s32.totalorder %s22, 0
    %p64 = por %p62, %p63
    %p65 = scmp.ne.s32.totalorder %s53, %s54
    %p66 = scmp.eq.s32.totalorder %s23, 3
    %p67 = por %p65, %p66
    %p69 = scmp.ne.s32.totalorder %s54, %s68
    %p70 = scmp.eq.s32.totalorder %s23, 0
    %p71 = por %p69, %p70
    %s73 = sadd.s32 %s72, 1
    %p76 = scmp.eq.s32.totalorder %s17, 3
    %p77 = scmp.ne.s32.totalorder %s72, %s74
    %p78 = scmp.eq.s32.totalorder %s17, 0
    %p79 = por %p77, %p78
    %p80 = scmp.ne.s32.totalorder %s72, %s74
    %p81 = scmp.eq.s32.totalorder %s22, 3
    %p82 = por %p80, %p81
    %p83 = scmp.ne.s32.totalorder %s74, %s75
    %p84 = scmp.eq.s32.totalorder %s22, 0
    %p85 = por %p83, %p84
    %p86 = scmp.ne.s32.totalorder %s74, %s75
    %p87 = scmp.eq.s32.totalorder %s23, 3
    %p88 = por %p86, %p87
    %p90 = scmp.ne.s32.totalorder %s75, %s89
    %p91 = scmp.eq.s32.totalorder %s23, 0
    %p92 = por %p90, %p91
    %s94 = sadd.s32 %s93, 1
    %p97 = scmp.eq.s32.totalorder %s17, 3
    %p98 = scmp.ne.s32.totalorder %s93, %s95
    %p99 = scmp.eq.s32.totalorder %s17, 0
    %p100 = por %p98, %p99
    %p101 = scmp.ne.s32.totalorder %s93, %s95
    %p102 = scmp.eq.s32.totalorder %s22, 3
    %p103 = por %p101, %p102
    %p104 = scmp.ne.s32.totalorder %s95, %s96
    %p105 = scmp.eq.s32.totalorder %s22, 0
    %p106 = por %p104, %p105
    %p107 = scmp.ne.s32.totalorder %s95, %s96
    %p108 = scmp.eq.s32.totalorder %s23, 3
    %p109 = por %p107, %p108
    %p111 = scmp.ne.s32.totalorder %s96, %s110
    %p112 = scmp.eq.s32.totalorder %s23, 0
    %p113 = por %p111, %p112
    %s115 = sadd.s32 %s114, 1
    %p118 = scmp.eq.s32.totalorder %s17, 3
    %p119 = scmp.ne.s32.totalorder %s114, %s116
    %p120 = scmp.eq.s32.totalorder %s17, 0
    %p121 = por %p119, %p120
    %p122 = scmp.ne.s32.totalorder %s114, %s116
    %p123 = scmp.eq.s32.totalorder %s22, 3
    %p124 = por %p122, %p123
    %p125 = scmp.ne.s32.totalorder %s116, %s117
    %p126 = scmp.eq.s32.totalorder %s22, 0
    %p127 = por %p125, %p126
    %p128 = scmp.ne.s32.totalorder %s116, %s117
    %p129 = scmp.eq.s32.totalorder %s23, 3
    %p130 = por %p128, %p129
    %p132 = scmp.ne.s32.totalorder %s117, %s131
    %p133 = scmp.eq.s32.totalorder %s23, 0
    %p134 = por %p132, %p133
    %s136 = sadd.s32 %s135, 1
    %p139 = scmp.eq.s32.totalorder %s17, 3
    %p140 = scmp.ne.s32.totalorder %s135, %s137
    %p141 = scmp.eq.s32.totalorder %s17, 0
    %p142 = por %p140, %p141
    %p143 = scmp.ne.s32.totalorder %s135, %s137
    %p144 = scmp.eq.s32.totalorder %s22, 3
    %p145 = por %p143, %p144
    %p146 = scmp.ne.s32.totalorder %s137, %s138
    %p147 = scmp.eq.s32.totalorder %s22, 0
    %p148 = por %p146, %p147
    %p149 = scmp.ne.s32.totalorder %s137, %s138
    %p150 = scmp.eq.s32.totalorder %s23, 3
    %p151 = por %p149, %p150
    %p153 = scmp.ne.s32.totalorder %s138, %s152
    %p154 = scmp.eq.s32.totalorder %s23, 0
    %p155 = por %p153, %p154
    %s157 = sadd.s32 %s156, 1
    %p160 = scmp.eq.s32.totalorder %s17, 3
    %p161 = scmp.ne.s32.totalorder %s156, %s158
    %p162 = scmp.eq.s32.totalorder %s17, 0
    %p163 = por %p161, %p162
    %p164 = scmp.ne.s32.totalorder %s156, %s158
    %p165 = scmp.eq.s32.totalorder %s22, 3
    %p166 = por %p164, %p165
    %p167 = scmp.ne.s32.totalorder %s158, %s159
    %p168 = scmp.eq.s32.totalorder %s22, 0
    %p169 = por %p167, %p168
    %p170 = scmp.ne.s32.totalorder %s158, %s159
    %p171 = scmp.eq.s32.totalorder %s23, 3
    %p172 = por %p170, %p171
    %p174 = scmp.ne.s32.totalorder %s159, %s173
    %p175 = scmp.eq.s32.totalorder %s23, 0
    %p176 = por %p174, %p175
    %s178 = sadd.s32 %s177, 1
    %p181 = scmp.eq.s32.totalorder %s17, 3
    %p182 = scmp.ne.s32.totalorder %s177, %s179
    %p183 = scmp.eq.s32.totalorder %s17, 0
    %p184 = por %p182, %p183
    %p185 = scmp.ne.s32.totalorder %s177, %s179
    %p186 = scmp.eq.s32.totalorder %s22, 3
    %p187 = por %p185, %p186
    %p188 = scmp.ne.s32.totalorder %s179, %s180
    %p189 = scmp.eq.s32.totalorder %s22, 0
    %p190 = por %p188, %p189
    %p191 = scmp.ne.s32.totalorder %s179, %s180
    %p192 = scmp.eq.s32.totalorder %s23, 3
    %p193 = por %p191, %p192
    %p195 = scmp.ne.s32.totalorder %s180, %s194
    %p196 = scmp.eq.s32.totalorder %s23, 0
    %p197 = por %p195, %p196
    %s199 = sadd.s32 %s198, 1
    %p202 = scmp.eq.s32.totalorder %s17, 3
    %p203 = scmp.ne.s32.totalorder %s198, %s200
    %p204 = scmp.eq.s32.totalorder %s17, 0
    %p205 = por %p203, %p204
    %p206 = scmp.ne.s32.totalorder %s198, %s200
    %p207 = scmp.eq.s32.totalorder %s22, 3
    %p208 = por %p206, %p207
    %p209 = scmp.ne.s32.totalorder %s200, %s201
    %p210 = scmp.eq.s32.totalorder %s22, 0
    %p211 = por %p209, %p210
    %p212 = scmp.ne.s32.totalorder %s200, %s201
    %p213 = scmp.eq.s32.totalorder %s23, 3
    %p214 = por %p212, %p213
    %p216 = scmp.ne.s32.totalorder %s201, %s215
    %p217 = scmp.eq.s32.totalorder %s23, 0
    %p218 = por %p216, %p217
    %s220 = sadd.s32 %s219, 1
    %p223 = scmp.eq.s32.totalorder %s17, 3
    %p224 = scmp.ne.s32.totalorder %s219, %s221
    %p225 = scmp.eq.s32.totalorder %s17, 0
    %p226 = por %p224, %p225
    %p227 = scmp.ne.s32.totalorder %s219, %s221
    %p228 = scmp.eq.s32.totalorder %s22, 3
    %p229 = por %p227, %p228
    %p230 = scmp.ne.s32.totalorder %s221, %s222
    %p231 = scmp.eq.s32.totalorder %s22, 0
    %p232 = por %p230, %p231
    %p233 = scmp.ne.s32.totalorder %s221, %s222
    %p234 = scmp.eq.s32.totalorder %s23, 3
    %p235 = por %p233, %p234
    %p237 = scmp.ne.s32.totalorder %s222, %s236
    %p238 = scmp.eq.s32.totalorder %s23, 0
    %p239 = por %p237, %p238
    %s241 = sadd.s32 %s240, 1
    %p244 = scmp.eq.s32.totalorder %s17, 3
    %p245 = scmp.ne.s32.totalorder %s240, %s242
    %p246 = scmp.eq.s32.totalorder %s17, 0
    %p247 = por %p245, %p246
    %p248 = scmp.ne.s32.totalorder %s240, %s242
    %p249 = scmp.eq.s32.totalorder %s22, 3
    %p250 = por %p248, %p249
    %p251 = scmp.ne.s32.totalorder %s242, %s243
    %p252 = scmp.eq.s32.totalorder %s22, 0
    %p253 = por %p251, %p252
    %p254 = scmp.ne.s32.totalorder %s242, %s243
    %p255 = scmp.eq.s32.totalorder %s23, 3
    %p256 = por %p254, %p255
    %p258 = scmp.ne.s32.totalorder %s243, %s257
    %p259 = scmp.eq.s32.totalorder %s23, 0
    %p260 = por %p258, %p259
    %s261 = ssub.s32 %s17, %s24
    %p262 = scmp.eq.s32.totalorder %s261, 0
    %s264 = sadd.s32 %s263, 1
    %s265 = scalar_select %p262, %s263, %s264
    %p268 = pneg %p262
    %p269 = scmp.eq.s32.totalorder %s17, 3
    %p270 = por %p268, %p269
    %p271 = scmp.ne.s32.totalorder %s263, %s266
    %p272 = scmp.eq.s32.totalorder %s17, 0
    %p273 = por %p271, %p272
    %p274 = scmp.ne.s32.totalorder %s263, %s266
    %p275 = scmp.eq.s32.totalorder %s22, 3
    %p276 = por %p274, %p275
    %p277 = scmp.ne.s32.totalorder %s266, %s267
    %p278 = scmp.eq.s32.totalorder %s22, 0
    %p279 = por %p277, %p278
    %p280 = scmp.ne.s32.totalorder %s266, %s267
    %p281 = scmp.eq.s32.totalorder %s23, 3
    %p282 = por %p280, %p281
    %p284 = scmp.ne.s32.totalorder %s267, %s283
    %p285 = scmp.eq.s32.totalorder %s23, 0
    %p286 = por %p284, %p285
    %p287 = scmp.le.s32.totalorder 1, %s17
    %p288 = scmp.lt.s32.totalorder %s17, 5
    %p289 = pnand %p287, %p288
    %p290 = pneg %p289
    // Predicated region
    $region9: #{tpu_custom_call.1} parent=5 // pred_check
      _
    $region10: #{tpu_custom_call.1} parent=5 // pred_check_branch
      %292 = sbr.rel (%p289) target = $region12
    $region11: #{tpu_custom_call.1} parent=5 // pred_region
      %s293 = ssub.s32 %s17, 1
      // Predicated region
      $region13: #{tpu_custom_call.1} parent=11 // pred_check
        %p294 = pneg %p64
      $region14: #{tpu_custom_call.1} parent=11 // pred_check_branch
        %296 = sbr.rel (%p294) target = $region16
      $region15: #{tpu_custom_call.1} parent=11 // pred_region
        _
      $region16: #{tpu_custom_call.1} parent=11 // pred_fallthru
        _
      // Predicated region
      $region17: #{tpu_custom_call.1} parent=11 // pred_check
        %p297 = pneg %p85
      $region18: #{tpu_custom_call.1} parent=11 // pred_check_branch
        %299 = sbr.rel (%p297) target = $region20
      $region19: #{tpu_custom_call.1} parent=11 // pred_region
        _
      $region20: #{tpu_custom_call.1} parent=11 // pred_fallthru
        _
      // Predicated region
      $region21: #{tpu_custom_call.1} parent=11 // pred_check
        %p300 = pneg %p106
      $region22: #{tpu_custom_call.1} parent=11 // pred_check_branch
        %302 = sbr.rel (%p300) target = $region24
      $region23: #{tpu_custom_call.1} parent=11 // pred_region
        _
      $region24: #{tpu_custom_call.1} parent=11 // pred_fallthru
        _
      // Predicated region
      $region25: #{tpu_custom_call.1} parent=11 // pred_check
        %p303 = pneg %p127
      $region26: #{tpu_custom_call.1} parent=11 // pred_check_branch
        %305 = sbr.rel (%p303) target = $region28
      $region27: #{tpu_custom_call.1} parent=11 // pred_region
        _
      $region28: #{tpu_custom_call.1} parent=11 // pred_fallthru
        _
      // Predicated region
      $region29: #{tpu_custom_call.1} parent=11 // pred_check
        %p306 = pneg %p148
      $region30: #{tpu_custom_call.1} parent=11 // pred_check_branch
        %308 = sbr.rel (%p306) target = $region32
      $region31: #{tpu_custom_call.1} parent=11 // pred_region
        _
      $region32: #{tpu_custom_call.1} parent=11 // pred_fallthru
        _
      // Predicated region
      $region33: #{tpu_custom_call.1} parent=11 // pred_check
        %p309 = pneg %p169
      $region34: #{tpu_custom_call.1} parent=11 // pred_check_branch
        %311 = sbr.rel (%p309) target = $region36
      $region35: #{tpu_custom_call.1} parent=11 // pred_region
        _
      $region36: #{tpu_custom_call.1} parent=11 // pred_fallthru
        _
      // Predicated region
      $region37: #{tpu_custom_call.1} parent=11 // pred_check
        %p312 = pneg %p190
      $region38: #{tpu_custom_call.1} parent=11 // pred_check_branch
        %314 = sbr.rel (%p312) target = $region40
      $region39: #{tpu_custom_call.1} parent=11 // pred_region
        _
      $region40: #{tpu_custom_call.1} parent=11 // pred_fallthru
        _
      // Predicated region
      $region41: #{tpu_custom_call.1} parent=11 // pred_check
        %p315 = pneg %p211
      $region42: #{tpu_custom_call.1} parent=11 // pred_check_branch
        %317 = sbr.rel (%p315) target = $region44
      $region43: #{tpu_custom_call.1} parent=11 // pred_region
        _
      $region44: #{tpu_custom_call.1} parent=11 // pred_fallthru
        _
      // Predicated region
      $region45: #{tpu_custom_call.1} parent=11 // pred_check
        %p318 = pneg %p232
      $region46: #{tpu_custom_call.1} parent=11 // pred_check_branch
        %320 = sbr.rel (%p318) target = $region48
      $region47: #{tpu_custom_call.1} parent=11 // pred_region
        _
      $region48: #{tpu_custom_call.1} parent=11 // pred_fallthru
        _
      // Predicated region
      $region49: #{tpu_custom_call.1} parent=11 // pred_check
        %p321 = pneg %p253
      $region50: #{tpu_custom_call.1} parent=11 // pred_check_branch
        %323 = sbr.rel (%p321) target = $region52
      $region51: #{tpu_custom_call.1} parent=11 // pred_region
        _
      $region52: #{tpu_custom_call.1} parent=11 // pred_fallthru
        _
    $region12: #{tpu_custom_call.1} parent=5 // pred_fallthru
      _
    %p324 = scmp.lt.s32.totalorder %s17, 4
    // Predicated region
    $region53: #{tpu_custom_call.1} parent=5 // pred_check
      %p325 = pneg %p324
    $region54: #{tpu_custom_call.1} parent=5 // pred_check_branch
      %327 = sbr.rel (%p325) target = $region56
    $region55: #{tpu_custom_call.1} parent=5 // pred_region
      // Predicated region
      $region57: #{tpu_custom_call.1} parent=55 // pred_check
        %p328 = pneg %p37
      $region58: #{tpu_custom_call.1} parent=55 // pred_check_branch
        %330 = sbr.rel (%p328) target = $region60
      $region59: #{tpu_custom_call.1} parent=55 // pred_region
        %s331 = smul.u32 8, %s17
        %p332 = scmp.lt.s32.totalorder %s331, 31
        %s333 = scalar_select %p332, %s331, 31
        %s334 = smul.addr %s333, 8
        %s335 = scalar_lea.vmem %s0, %s334
        %s336 = smul.u32 8, %s17
      $region60: #{tpu_custom_call.1} parent=55 // pred_fallthru
        _
    $region56: #{tpu_custom_call.1} parent=5 // pred_fallthru
      _
    %p337 = scmp.le.s32.totalorder 1, %s17
    %p338 = scmp.lt.s32.totalorder %s17, 5
    %p339 = pnand %p337, %p338
    %p340 = pneg %p339
    // Predicated region
    $region61: #{tpu_custom_call.1} parent=5 // pred_check
      _
    $region62: #{tpu_custom_call.1} parent=5 // pred_check_branch
      %342 = sbr.rel (%p339) target = $region64
    $region63: #{tpu_custom_call.1} parent=5 // pred_region
      %s343 = ssub.s32 %s17, 1
      %s344 = smul.u32 8, %s22
      %p345 = scmp.lt.s32.totalorder %s344, 31
      %s346 = scalar_select %p345, %s344, 31
      %s347 = smul.addr %s346, 8
      %s348 = scalar_lea.vmem %s0, %s347
      %p349 = pneg %p43
      %p350 = pneg %p40
      %p351 = pneg %p64
      %p352 = pneg %p61
      %p353 = pneg %p85
      %p354 = pneg %p82
      %p355 = pneg %p106
      %p356 = pneg %p103
      %p357 = pneg %p127
      %p358 = pneg %p124
      %p359 = pneg %p148
      %p360 = pneg %p145
      %p361 = pneg %p169
      %p362 = pneg %p166
      %p363 = pneg %p190
      %p364 = pneg %p187
      %p365 = pneg %p211
      %p366 = pneg %p208
      %p367 = pneg %p232
      %p368 = pneg %p229
      %p369 = pneg %p253
      %p370 = pneg %p250
      %p371 = pneg %p279
      %p372 = pneg %p276
      %s373 = smul.u32 8, %s22
      %p374 = scmp.lt.s32.totalorder %s373, 31
      %s375 = scalar_select %p374, %s373, 31
      %s376 = smul.addr %s375, 8
      %s377 = scalar_lea.vmem %s11, %s376
      %s378 = smul.u32 8, %s22
      %p379 = scmp.lt.s32.totalorder %s378, 31
      %s380 = scalar_select %p379, %s378, 31
      %s381 = smul.addr %s380, 8
      %s382 = scalar_lea.vmem %s0, %s381
      %s383 = smul.u32 8, %s22
      %s384 = smul.u32 8, %s22
      %p385 = scmp.lt.s32.totalorder %s384, 31
      %s386 = scalar_select %p385, %s384, 31
      %s387 = smul.addr %s386, 8
      %s388 = scalar_lea.vmem %s11, %s387
      %s389 = smul.u32 8, %s22
      %p390 = scmp.eq.s32.totalorder %s22, 0
      // Predicated region
      $region65: #{tpu_custom_call.1} parent=63 // pred_check
        %p391 = pneg %p390
      $region66: #{tpu_custom_call.1} parent=63 // pred_check_branch
        %393 = sbr.rel (%p391) target = $region68
      $region67: #{tpu_custom_call.1} parent=63 // pred_region
        %v394 = vld [vmem:[%s1] sm:$0xff]
        %vm395 = vcmask 130048
        %396 = vst.msk [vmem:[#allocation2] sm:$0xff] %vm395, %v394
        %v397 = vld [vmem:[%s2] sm:$0xff]
        %398 = vst [vmem:[#allocation3] sm:$0xff] %v397
      $region68: #{tpu_custom_call.1} parent=63 // pred_fallthru
        _
      %v399 = vld [vmem:[%s382] sm:$0xff]
      %v400 = vld [vmem:[%s382 + $0x8] sm:$0xff]
      %v401 = vld [vmem:[%s382 + $0x10] sm:$0xff]
      %v402 = vld [vmem:[%s382 + $0x18] sm:$0xff]
      %v403 = vld [vmem:[%s382 + $0x20] sm:$0xff]
      %v404 = vld [vmem:[%s382 + $0x28] sm:$0xff]
      %v405 = vld [vmem:[%s382 + $0x30] sm:$0xff]
      %v406 = vld [vmem:[%s382 + $0x38] sm:$0xff]
      %v407 = vld [vmem:[%s3] sm:$0xf]
      %v408 = vld [vmem:[%s4] sm:$0x1]
      %v410 = vlaneseq
      %v411 = vshrl.u32 %v410, 7
      %v412 = vsub.s32 0, %v411
      %v413 = vrot.slane %v408, %v412
      %vm415 = vcmask 31744
      %v417 = vsel %vm415, %v399, 0
      %v420 = vsel %vm415, %v400, 0
      %v423 = vsel %vm415, %v401, 0
      %v426 = vsel %vm415, %v402, 0
      %v429 = vsel %vm415, %v403, 0
      %v432 = vsel %vm415, %v404, 0
      %v435 = vsel %vm415, %v405, 0
      %v438 = vsel %vm415, %v406, 0
      %vm440 = vcmask 1043456
      %v442 = vsel %vm440, %v407, 0
      %444 = vmatprep.subr.mxu0 0.0
      %445 = vmatpush1.msra.mxu0 %v442
      %446 = vmatprep.subr.mxu0 0.0
      %447 = vmatpush1.msra.mxu0 0.0
      %448 = vmatprep.subr.mxu0 0.0
      %449 = vmatpush1.msra.mxu0 0.0
      %450 = vmatprep.subr.mxu0 0.0
      %451 = vmatpush1.msra.mxu0 0.0
      %452 = vmatprep.subr.mxu0 0.0
      %453 = vmatpush1.msra.mxu0 0.0
      %454 = vmatprep.subr.mxu0 0.0
      %455 = vmatpush1.msra.mxu0 0.0
      %456 = vmatprep.subr.mxu0 0.0
      %457 = vmatpush1.msra.mxu0 0.0
      %458 = vmatprep.subr.mxu0 0.0
      %459 = vmatpush1.msra.mxu0 0.0
      %460 = vmatprep.subr.mxu0 0.0
      %461 = vmatpush1.msra.mxu0 0.0
      %462 = vmatprep.subr.mxu0 0.0
      %463 = vmatpush1.msra.mxu0 0.0
      %464 = vmatprep.subr.mxu0 0.0
      %465 = vmatpush1.msra.mxu0 0.0
      %466 = vmatprep.subr.mxu0 0.0
      %467 = vmatpush1.msra.mxu0 0.0
      %468 = vmatprep.subr.mxu0 0.0
      %469 = vmatpush1.msra.mxu0 0.0
      %470 = vmatprep.subr.mxu0 0.0
      %471 = vmatpush1.msra.mxu0 0.0
      %472 = vmatprep.subr.mxu0 0.0
      %473 = vmatpush1.msra.mxu0 0.0
      %474 = vmatprep.subr.mxu0 0.0
      %475 = vmatpush1.msra.mxu0 0.0
      %476 = vmatprep.subr.mxu0 0.0
      %477 = vmatpush1.msra.mxu0 0.0
      %478 = vmatprep.subr.mxu0 0.0
      %479 = vmatpush1.msra.mxu0 0.0
      %480 = vmatprep.subr.mxu0 0.0
      %481 = vmatpush1.msra.mxu0 0.0
      %482 = vmatprep.subr.mxu0 0.0
      %483 = vmatpush1.msra.mxu0 0.0
      %484 = vmatprep.subr.mxu0 0.0
      %485 = vmatpush1.msra.mxu0 0.0
      %486 = vmatprep.subr.mxu0 0.0
      %487 = vmatpush1.msra.mxu0 0.0
      %488 = vmatprep.subr.mxu0 0.0
      %489 = vmatpush1.msra.mxu0 0.0
      %490 = vmatprep.subr.mxu0 0.0
      %491 = vmatpush1.msra.mxu0 0.0
      %492 = vmatprep.subr.mxu0 0.0
      %493 = vmatpush1.msra.mxu0 0.0
      %494 = vmatprep.subr.mxu0 0.0
      %495 = vmatpush1.msra.mxu0 0.0
      %496 = vmatprep.subr.mxu0 0.0
      %497 = vmatpush1.msra.mxu0 0.0
      %498 = vmatprep.subr.mxu0 0.0
      %499 = vmatpush1.msra.mxu0 0.0
      %500 = vmatprep.subr.mxu0 0.0
      %501 = vmatpush1.msra.mxu0 0.0
      %502 = vmatprep.subr.mxu0 0.0
      %503 = vmatpush1.msra.mxu0 0.0
      %504 = vmatprep.subr.mxu0 0.0
      %505 = vmatpush1.msra.mxu0 0.0
      %506 = vmatprep.subr.mxu0 0.0
      %507 = vmatpush1.msra.mxu0 0.0
      %508 = vmatprep.mubr.f32.mxu0 0.0
      %509 = vmatmul.mubr.f32.gmra.mrb[0].mxu0 %v417
      %v510 = vpop.f32.mrb[0].mxu0
      %v511 = vadd.f32 %v413, %v510
      %v512 = vpop.f32.mrb[0].mxu0
      %513 = vmatprep.mubr.f32.mxu0 0.0
      %514 = vmatmul.mubr.f32.gmra.mrb[0].mxu0 %v420
      %v515 = vpop.f32.mrb[0].mxu0
      %v516 = vadd.f32 %v413, %v515
      %v517 = vpop.f32.mrb[0].mxu0
      %518 = vmatprep.mubr.f32.mxu0 0.0
      %519 = vmatmul.mubr.f32.gmra.mrb[0].mxu0 %v423
      %v520 = vpop.f32.mrb[0].mxu0
      %v521 = vadd.f32 %v413, %v520
      %v522 = vpop.f32.mrb[0].mxu0
      %523 = vmatprep.mubr.f32.mxu0 0.0
      %524 = vmatmul.mubr.f32.gmra.mrb[0].mxu0 %v426
      %v525 = vpop.f32.mrb[0].mxu0
      %v526 = vadd.f32 %v413, %v525
      %v527 = vpop.f32.mrb[0].mxu0
      %528 = vmatprep.mubr.f32.mxu0 0.0
      %529 = vmatmul.mubr.f32.gmra.mrb[0].mxu0 %v429
      %v530 = vpop.f32.mrb[0].mxu0
      %v531 = vadd.f32 %v413, %v530
      %v532 = vpop.f32.mrb[0].mxu0
      %533 = vmatprep.mubr.f32.mxu0 0.0
      %534 = vmatmul.mubr.f32.gmra.mrb[0].mxu0 %v432
      %v535 = vpop.f32.mrb[0].mxu0
      %v536 = vadd.f32 %v413, %v535
      %v537 = vpop.f32.mrb[0].mxu0
      %538 = vmatprep.mubr.f32.mxu0 0.0
      %539 = vmatmul.mubr.f32.gmra.mrb[0].mxu0 %v435
      %v540 = vpop.f32.mrb[0].mxu0
      %v541 = vadd.f32 %v413, %v540
      %v542 = vpop.f32.mrb[0].mxu0
      %543 = vmatprep.mubr.f32.mxu0 0.0
      %544 = vmatmul.mubr.f32.gmra.mrb[0].mxu0 %v438
      %v545 = vpop.f32.mrb[0].mxu0
      %v546 = vadd.f32 %v413, %v545
      %v547 = vpop.f32.mrb[0].mxu0
      %548 = vdwg.mxu0
      %549 = vst [vmem:[#allocation4] sm:$0xff] %v511
      %550 = vst [vmem:[#allocation4 + $0x8] sm:$0xff] %v516
      %551 = vst [vmem:[#allocation4 + $0x10] sm:$0xff] %v521
      %552 = vst [vmem:[#allocation4 + $0x18] sm:$0xff] %v526
      %553 = vst [vmem:[#allocation4 + $0x20] sm:$0xff] %v531
      %554 = vst [vmem:[#allocation4 + $0x28] sm:$0xff] %v536
      %555 = vst [vmem:[#allocation4 + $0x30] sm:$0xff] %v541
      %556 = vst [vmem:[#allocation4 + $0x38] sm:$0xff] %v546
      %v557 = vld [vmem:[%s5] sm:$0xff]
      %v558 = vld [vmem:[%s5 + $0x8] sm:$0xff]
      %v559 = vld [vmem:[%s5 + $0x10] sm:$0xff]
      %v560 = vld [vmem:[%s5 + $0x18] sm:$0xff]
      %v561 = vld [vmem:[%s5 + $0x20] sm:$0xff]
      %v562 = vld [vmem:[%s5 + $0x28] sm:$0xff]
      %v563 = vld [vmem:[%s5 + $0x30] sm:$0xff]
      %v564 = vld [vmem:[%s5 + $0x38] sm:$0xff]
      %v565 = vld [vmem:[%s5 + $0x40] sm:$0xff]
      %v566 = vld [vmem:[%s5 + $0x48] sm:$0xff]
      %v567 = vld [vmem:[%s5 + $0x50] sm:$0xff]
      %v568 = vld [vmem:[%s5 + $0x58] sm:$0xff]
      %v569 = vld [vmem:[%s5 + $0x60] sm:$0xff]
      %v570 = vld [vmem:[%s5 + $0x68] sm:$0xff]
      %v571 = vld [vmem:[%s5 + $0x70] sm:$0xff]
      %v572 = vld [vmem:[%s5 + $0x78] sm:$0xff]
      %v573 = vld [vmem:[%s7] sm:$0xff]
      %v574 = vld [vmem:[%s7 + $0x8] sm:$0xff]
      %v575 = vld [vmem:[%s7 + $0x10] sm:$0xff]
      %v576 = vld [vmem:[%s7 + $0x18] sm:$0xff]
      %v577 = vld [vmem:[%s7 + $0x20] sm:$0xff]
      %v578 = vld [vmem:[%s7 + $0x28] sm:$0xff]
      %v579 = vld [vmem:[%s7 + $0x30] sm:$0xff]
      %v580 = vld [vmem:[%s7 + $0x38] sm:$0xff]
      %v581 = vld [vmem:[%s7 + $0x40] sm:$0xff]
      %v582 = vld [vmem:[%s7 + $0x48] sm:$0xff]
      %v583 = vld [vmem:[%s7 + $0x50] sm:$0xff]
      %v584 = vld [vmem:[%s7 + $0x58] sm:$0xff]
      %v585 = vld [vmem:[%s7 + $0x60] sm:$0xff]
      %v586 = vld [vmem:[%s7 + $0x68] sm:$0xff]
      %v587 = vld [vmem:[%s7 + $0x70] sm:$0xff]
      %v588 = vld [vmem:[%s7 + $0x78] sm:$0xff]
      %v589 = vld [vmem:[%s9] sm:$0xff]
      %v590 = vld [vmem:[%s9 + $0x8] sm:$0xff]
      %v591 = vld [vmem:[%s9 + $0x10] sm:$0xff]
      %v592 = vld [vmem:[%s9 + $0x18] sm:$0xff]
      %v593 = vld [vmem:[%s9 + $0x20] sm:$0xff]
      %v594 = vld [vmem:[%s9 + $0x28] sm:$0xff]
      %v595 = vld [vmem:[%s9 + $0x30] sm:$0xff]
      %v596 = vld [vmem:[%s9 + $0x38] sm:$0xff]
      %v597 = vld [vmem:[%s9 + $0x40] sm:$0xff]
      %v598 = vld [vmem:[%s9 + $0x48] sm:$0xff]
      %v599 = vld [vmem:[%s9 + $0x50] sm:$0xff]
      %v600 = vld [vmem:[%s9 + $0x58] sm:$0xff]
      %v601 = vld [vmem:[%s9 + $0x60] sm:$0xff]
      %v602 = vld [vmem:[%s9 + $0x68] sm:$0xff]
      %v603 = vld [vmem:[%s9 + $0x70] sm:$0xff]
      %v604 = vld [vmem:[%s9 + $0x78] sm:$0xff]
      %v605 = vld [vmem:[%s6] sm:$0x1]
      %v607 = vlaneseq
      %v608 = vshrl.u32 %v607, 7
      %v609 = vsub.s32 0, %v608
      %v610 = vrot.slane %v605, %v609
      %v612 = vld [vmem:[%s8] sm:$0x1]
      %v614 = vlaneseq
      %v615 = vshrl.u32 %v614, 7
      %v616 = vsub.s32 0, %v615
      %v617 = vrot.slane %v612, %v616
      %v619 = vld [vmem:[%s10] sm:$0x1]
      %v621 = vlaneseq
      %v622 = vshrl.u32 %v621, 7
      %v623 = vsub.s32 0, %v622
      %v624 = vrot.slane %v619, %v623
      %v626 = vld [vmem:[#allocation2] sm:$0xff]
      %v627 = vld [vmem:[#allocation3] sm:$0xff]
      loop: start=0, step=1, limit=8
      $region69: #{tpu_custom_call.1} parent=63 // loop_pre_header
        _
      $region70: #{tpu_custom_call.1} parent=63 // loop_header
        %s629 = sphi 0, %s633
        %p630 = scmp.ge.s32.totalorder %s629, 8
        %v634 = vphi %v626, %v2434
        %v635 = vphi %v627, %v2362
      $region71: #{tpu_custom_call.1} parent=63 // loop_header_branch
        %632 = sbr.rel (%p630) target = $region75
      $region72: #{tpu_custom_call.1} parent=63 // loop_body
        %s636 = smul.u32 %s629, 8
        %s637 = scalar_lea.vmem [#allocation4], %s636
        %v638 = vld [vmem:[%s637] sm:$0xff]
        %v639 = vlaneseq
        %v640 = vshrl.u32 %v639, 7
        %v641 = vsub.s32 0, %v640
        %v642 = vrot.slane %v638, %v641
        %v643 = vadd.f32 %v635, %v642
        %v644 = vtanh.pop %v643
        %645 = vmatprep.subr.mxu0 0.0
        %646 = vmatpush1.msra.mxu0 %v557
        %647 = vmatprep.subr.mxu0 0.0
        %648 = vmatpush1.msra.mxu0 %v558
        %649 = vmatprep.subr.mxu0 0.0
        %650 = vmatpush1.msra.mxu0 %v559
        %651 = vmatprep.subr.mxu0 0.0
        %652 = vmatpush1.msra.mxu0 %v560
        %653 = vmatprep.subr.mxu0 0.0
        %654 = vmatpush1.msra.mxu0 %v561
        %655 = vmatprep.subr.mxu0 0.0
        %656 = vmatpush1.msra.mxu0 %v562
        %657 = vmatprep.subr.mxu0 0.0
        %658 = vmatpush1.msra.mxu0 %v563
        %659 = vmatprep.subr.mxu0 0.0
        %660 = vmatpush1.msra.mxu0 %v564
        %661 = vmatprep.subr.mxu0 0.0
        %662 = vmatpush1.msra.mxu0 %v565
        %663 = vmatprep.subr.mxu0 0.0
        %664 = vmatpush1.msra.mxu0 %v566
        %665 = vmatprep.subr.mxu0 0.0
        %666 = vmatpush1.msra.mxu0 %v567
        %667 = vmatprep.subr.mxu0 0.0
        %668 = vmatpush1.msra.mxu0 %v568
        %669 = vmatprep.subr.mxu0 0.0
        %670 = vmatpush1.msra.mxu0 %v569
        %671 = vmatprep.subr.mxu0 0.0
        %672 = vmatpush1.msra.mxu0 %v570
        %673 = vmatprep.subr.mxu0 0.0
        %674 = vmatpush1.msra.mxu0 %v571
        %675 = vmatprep.subr.mxu0 0.0
        %676 = vmatpush1.msra.mxu0 %v572
        %677 = vmatprep.subr.mxu0 0.0
        %678 = vmatpush1.msra.mxu0 0.0
        %679 = vmatprep.subr.mxu0 0.0
        %680 = vmatpush1.msra.mxu0 0.0
        %681 = vmatprep.subr.mxu0 0.0
        %682 = vmatpush1.msra.mxu0 0.0
        %683 = vmatprep.subr.mxu0 0.0
        %684 = vmatpush1.msra.mxu0 0.0
        %685 = vmatprep.subr.mxu0 0.0
        %686 = vmatpush1.msra.mxu0 0.0
        %687 = vmatprep.subr.mxu0 0.0
        %688 = vmatpush1.msra.mxu0 0.0
        %689 = vmatprep.subr.mxu0 0.0
        %690 = vmatpush1.msra.mxu0 0.0
        %691 = vmatprep.subr.mxu0 0.0
        %692 = vmatpush1.msra.mxu0 0.0
        %693 = vmatprep.subr.mxu0 0.0
        %694 = vmatpush1.msra.mxu0 0.0
        %695 = vmatprep.subr.mxu0 0.0
        %696 = vmatpush1.msra.mxu0 0.0
        %697 = vmatprep.subr.mxu0 0.0
        %698 = vmatpush1.msra.mxu0 0.0
        %699 = vmatprep.subr.mxu0 0.0
        %700 = vmatpush1.msra.mxu0 0.0
        %701 = vmatprep.subr.mxu0 0.0
        %702 = vmatpush1.msra.mxu0 0.0
        %703 = vmatprep.subr.mxu0 0.0
        %704 = vmatpush1.msra.mxu0 0.0
        %705 = vmatprep.subr.mxu0 0.0
        %706 = vmatpush1.msra.mxu0 0.0
        %707 = vmatprep.subr.mxu0 0.0
        %708 = vmatpush1.msra.mxu0 0.0
        %709 = vmatprep.mubr.f32.mxu0 0.0
        %710 = vmatmul.mubr.f32.gmra.mrb[0].mxu0 %v644
        %v711 = vpop.f32.mrb[0].mxu0
        %v712 = vadd.f32 %v610, %v711
        %v713 = vpop.f32.mrb[0].mxu0
        %714 = vdwg.mxu0
        %v715 = vtanh.pop %v712
        %716 = vmatprep.subr.mxu0 0.0
        %717 = vmatpush1.msra.mxu0 %v589
        %718 = vmatprep.subr.mxu0 0.0
        %719 = vmatpush1.msra.mxu0 %v590
        %720 = vmatprep.subr.mxu0 0.0
        %721 = vmatpush1.msra.mxu0 %v591
        %722 = vmatprep.subr.mxu0 0.0
        %723 = vmatpush1.msra.mxu0 %v592
        %724 = vmatprep.subr.mxu0 0.0
        %725 = vmatpush1.msra.mxu0 %v593
        %726 = vmatprep.subr.mxu0 0.0
        %727 = vmatpush1.msra.mxu0 %v594
        %728 = vmatprep.subr.mxu0 0.0
        %729 = vmatpush1.msra.mxu0 %v595
        %730 = vmatprep.subr.mxu0 0.0
        %731 = vmatpush1.msra.mxu0 %v596
        %732 = vmatprep.subr.mxu0 0.0
        %733 = vmatpush1.msra.mxu0 %v597
        %734 = vmatprep.subr.mxu0 0.0
        %735 = vmatpush1.msra.mxu0 %v598
        %736 = vmatprep.subr.mxu0 0.0
        %737 = vmatpush1.msra.mxu0 %v599
        %738 = vmatprep.subr.mxu0 0.0
        %739 = vmatpush1.msra.mxu0 %v600
        %740 = vmatprep.subr.mxu0 0.0
        %741 = vmatpush1.msra.mxu0 %v601
        %742 = vmatprep.subr.mxu0 0.0
        %743 = vmatpush1.msra.mxu0 %v602
        %744 = vmatprep.subr.mxu0 0.0
        %745 = vmatpush1.msra.mxu0 %v603
        %746 = vmatprep.subr.mxu0 0.0
        %747 = vmatpush1.msra.mxu0 %v604
        %748 = vmatprep.subr.mxu0 0.0
        %749 = vmatpush1.msra.mxu0 0.0
        %750 = vmatprep.subr.mxu0 0.0
        %751 = vmatpush1.msra.mxu0 0.0
        %752 = vmatprep.subr.mxu0 0.0
        %753 = vmatpush1.msra.mxu0 0.0
        %754 = vmatprep.subr.mxu0 0.0
        %755 = vmatpush1.msra.mxu0 0.0
        %756 = vmatprep.subr.mxu0 0.0
        %757 = vmatpush1.msra.mxu0 0.0
        %758 = vmatprep.subr.mxu0 0.0
        %759 = vmatpush1.msra.mxu0 0.0
        %760 = vmatprep.subr.mxu0 0.0
        %761 = vmatpush1.msra.mxu0 0.0
        %762 = vmatprep.subr.mxu0 0.0
        %763 = vmatpush1.msra.mxu0 0.0
        %764 = vmatprep.subr.mxu0 0.0
        %765 = vmatpush1.msra.mxu0 0.0
        %766 = vmatprep.subr.mxu0 0.0
        %767 = vmatpush1.msra.mxu0 0.0
        %768 = vmatprep.subr.mxu0 0.0
        %769 = vmatpush1.msra.mxu0 0.0
        %770 = vmatprep.subr.mxu0 0.0
        %771 = vmatpush1.msra.mxu0 0.0
        %772 = vmatprep.subr.mxu0 0.0
        %773 = vmatpush1.msra.mxu0 0.0
        %774 = vmatprep.subr.mxu0 0.0
        %775 = vmatpush1.msra.mxu0 0.0
        %776 = vmatprep.subr.mxu0 0.0
        %777 = vmatpush1.msra.mxu0 0.0
        %778 = vmatprep.subr.mxu0 0.0
        %779 = vmatpush1.msra.mxu0 0.0
        %780 = vmatprep.mubr.f32.mxu0 0.0
        %781 = vmatmul.mubr.f32.gmra.mrb[0].mxu0 %v715
        %v782 = vpop.f32.mrb[0].mxu0
        %v783 = vadd.f32 0.0, %v782
        %v784 = vpop.f32.mrb[0].mxu0
        %785 = vdwg.mxu0
        %v786 = vadd.f32 %v635, %v783
        %v787 = vadd.f32 %v786, %v624
        %788 = vmatprep.subr.mxu0 0.0
        %789 = vmatpush1.msra.mxu0 %v573
        %790 = vmatprep.subr.mxu0 0.0
        %791 = vmatpush1.msra.mxu0 %v574
        %792 = vmatprep.subr.mxu0 0.0
        %793 = vmatpush1.msra.mxu0 %v575
        %794 = vmatprep.subr.mxu0 0.0
        %795 = vmatpush1.msra.mxu0 %v576
        %796 = vmatprep.subr.mxu0 0.0
        %797 = vmatpush1.msra.mxu0 %v577
        %798 = vmatprep.subr.mxu0 0.0
        %799 = vmatpush1.msra.mxu0 %v578
        %800 = vmatprep.subr.mxu0 0.0
        %801 = vmatpush1.msra.mxu0 %v579
        %802 = vmatprep.subr.mxu0 0.0
        %803 = vmatpush1.msra.mxu0 %v580
        %804 = vmatprep.subr.mxu0 0.0
        %805 = vmatpush1.msra.mxu0 %v581
        %806 = vmatprep.subr.mxu0 0.0
        %807 = vmatpush1.msra.mxu0 %v582
        %808 = vmatprep.subr.mxu0 0.0
        %809 = vmatpush1.msra.mxu0 %v583
        %810 = vmatprep.subr.mxu0 0.0
        %811 = vmatpush1.msra.mxu0 %v584
        %812 = vmatprep.subr.mxu0 0.0
        %813 = vmatpush1.msra.mxu0 %v585
        %814 = vmatprep.subr.mxu0 0.0
        %815 = vmatpush1.msra.mxu0 %v586
        %816 = vmatprep.subr.mxu0 0.0
        %817 = vmatpush1.msra.mxu0 %v587
        %818 = vmatprep.subr.mxu0 0.0
        %819 = vmatpush1.msra.mxu0 %v588
        %820 = vmatprep.subr.mxu0 0.0
        %821 = vmatpush1.msra.mxu0 0.0
        %822 = vmatprep.subr.mxu0 0.0
        %823 = vmatpush1.msra.mxu0 0.0
        %824 = vmatprep.subr.mxu0 0.0
        %825 = vmatpush1.msra.mxu0 0.0
        %826 = vmatprep.subr.mxu0 0.0
        %827 = vmatpush1.msra.mxu0 0.0
        %828 = vmatprep.subr.mxu0 0.0
        %829 = vmatpush1.msra.mxu0 0.0
        %830 = vmatprep.subr.mxu0 0.0
        %831 = vmatpush1.msra.mxu0 0.0
        %832 = vmatprep.subr.mxu0 0.0
        %833 = vmatpush1.msra.mxu0 0.0
        %834 = vmatprep.subr.mxu0 0.0
        %835 = vmatpush1.msra.mxu0 0.0
        %836 = vmatprep.subr.mxu0 0.0
        %837 = vmatpush1.msra.mxu0 0.0
        %838 = vmatprep.subr.mxu0 0.0
        %839 = vmatpush1.msra.mxu0 0.0
        %840 = vmatprep.subr.mxu0 0.0
        %841 = vmatpush1.msra.mxu0 0.0
        %842 = vmatprep.subr.mxu0 0.0
        %843 = vmatpush1.msra.mxu0 0.0
        %844 = vmatprep.subr.mxu0 0.0
        %845 = vmatpush1.msra.mxu0 0.0
        %846 = vmatprep.subr.mxu0 0.0
        %847 = vmatpush1.msra.mxu0 0.0
        %848 = vmatprep.subr.mxu0 0.0
        %849 = vmatpush1.msra.mxu0 0.0
        %850 = vmatprep.subr.mxu0 0.0
        %851 = vmatpush1.msra.mxu0 0.0
        %852 = vmatprep.mubr.f32.mxu0 0.0
        %853 = vmatmul.mubr.f32.gmra.mrb[0].mxu0 %v715
        %v854 = vpop.f32.mrb[0].mxu0
        %v855 = vadd.f32 0.0, %v854
        %v856 = vpop.f32.mrb[0].mxu0
        %857 = vdwg.mxu0
        %v858 = vadd.f32 %v634, %v855
        %v859 = vadd.f32 %v858, %v617
        %v860 = vmul.f32 %v859, 2.2675737e-05
        %s861 = scalar_lea.vmem %s388, %s636
        %vm862 = vcmask 122880
        %863 = vst.msk [vmem:[%s861] sm:$0x1] %vm862, %v860
        %v864 = vlaneseq
        %v865 = vshrl.u32 %v864, 7
        %v866 = vsub.s32 1, %v865
        %v867 = vrot.slane %v638, %v866
        %v868 = vadd.f32 %v787, %v867
        %v869 = vtanh.pop %v868
        %870 = vmatprep.subr.mxu0 0.0
        %871 = vmatpush1.msra.mxu0 %v557
        %872 = vmatprep.subr.mxu0 0.0
        %873 = vmatpush1.msra.mxu0 %v558
        %874 = vmatprep.subr.mxu0 0.0
        %875 = vmatpush1.msra.mxu0 %v559
        %876 = vmatprep.subr.mxu0 0.0
        %877 = vmatpush1.msra.mxu0 %v560
        %878 = vmatprep.subr.mxu0 0.0
        %879 = vmatpush1.msra.mxu0 %v561
        %880 = vmatprep.subr.mxu0 0.0
        %881 = vmatpush1.msra.mxu0 %v562
        %882 = vmatprep.subr.mxu0 0.0
        %883 = vmatpush1.msra.mxu0 %v563
        %884 = vmatprep.subr.mxu0 0.0
        %885 = vmatpush1.msra.mxu0 %v564
        %886 = vmatprep.subr.mxu0 0.0
        %887 = vmatpush1.msra.mxu0 %v565
        %888 = vmatprep.subr.mxu0 0.0
        %889 = vmatpush1.msra.mxu0 %v566
        %890 = vmatprep.subr.mxu0 0.0
        %891 = vmatpush1.msra.mxu0 %v567
        %892 = vmatprep.subr.mxu0 0.0
        %893 = vmatpush1.msra.mxu0 %v568
        %894 = vmatprep.subr.mxu0 0.0
        %895 = vmatpush1.msra.mxu0 %v569
        %896 = vmatprep.subr.mxu0 0.0
        %897 = vmatpush1.msra.mxu0 %v570
        %898 = vmatprep.subr.mxu0 0.0
        %899 = vmatpush1.msra.mxu0 %v571
        %900 = vmatprep.subr.mxu0 0.0
        %901 = vmatpush1.msra.mxu0 %v572
        %902 = vmatprep.subr.mxu0 0.0
        %903 = vmatpush1.msra.mxu0 0.0
        %904 = vmatprep.subr.mxu0 0.0
        %905 = vmatpush1.msra.mxu0 0.0
        %906 = vmatprep.subr.mxu0 0.0
        %907 = vmatpush1.msra.mxu0 0.0
        %908 = vmatprep.subr.mxu0 0.0
        %909 = vmatpush1.msra.mxu0 0.0
        %910 = vmatprep.subr.mxu0 0.0
        %911 = vmatpush1.msra.mxu0 0.0
        %912 = vmatprep.subr.mxu0 0.0
        %913 = vmatpush1.msra.mxu0 0.0
        %914 = vmatprep.subr.mxu0 0.0
        %915 = vmatpush1.msra.mxu0 0.0
        %916 = vmatprep.subr.mxu0 0.0
        %917 = vmatpush1.msra.mxu0 0.0
        %918 = vmatprep.subr.mxu0 0.0
        %919 = vmatpush1.msra.mxu0 0.0
        %920 = vmatprep.subr.mxu0 0.0
        %921 = vmatpush1.msra.mxu0 0.0
        %922 = vmatprep.subr.mxu0 0.0
        %923 = vmatpush1.msra.mxu0 0.0
        %924 = vmatprep.subr.mxu0 0.0
        %925 = vmatpush1.msra.mxu0 0.0
        %926 = vmatprep.subr.mxu0 0.0
        %927 = vmatpush1.msra.mxu0 0.0
        %928 = vmatprep.subr.mxu0 0.0
        %929 = vmatpush1.msra.mxu0 0.0
        %930 = vmatprep.subr.mxu0 0.0
        %931 = vmatpush1.msra.mxu0 0.0
        %932 = vmatprep.subr.mxu0 0.0
        %933 = vmatpush1.msra.mxu0 0.0
        %934 = vmatprep.mubr.f32.mxu0 0.0
        %935 = vmatmul.mubr.f32.gmra.mrb[0].mxu0 %v869
        %v936 = vpop.f32.mrb[0].mxu0
        %v937 = vadd.f32 %v610, %v936
        %v938 = vpop.f32.mrb[0].mxu0
        %939 = vdwg.mxu0
        %v940 = vtanh.pop %v937
        %941 = vmatprep.subr.mxu0 0.0
        %942 = vmatpush1.msra.mxu0 %v589
        %943 = vmatprep.subr.mxu0 0.0
        %944 = vmatpush1.msra.mxu0 %v590
        %945 = vmatprep.subr.mxu0 0.0
        %946 = vmatpush1.msra.mxu0 %v591
        %947 = vmatprep.subr.mxu0 0.0
        %948 = vmatpush1.msra.mxu0 %v592
        %949 = vmatprep.subr.mxu0 0.0
        %950 = vmatpush1.msra.mxu0 %v593
        %951 = vmatprep.subr.mxu0 0.0
        %952 = vmatpush1.msra.mxu0 %v594
        %953 = vmatprep.subr.mxu0 0.0
        %954 = vmatpush1.msra.mxu0 %v595
        %955 = vmatprep.subr.mxu0 0.0
        %956 = vmatpush1.msra.mxu0 %v596
        %957 = vmatprep.subr.mxu0 0.0
        %958 = vmatpush1.msra.mxu0 %v597
        %959 = vmatprep.subr.mxu0 0.0
        %960 = vmatpush1.msra.mxu0 %v598
        %961 = vmatprep.subr.mxu0 0.0
        %962 = vmatpush1.msra.mxu0 %v599
        %963 = vmatprep.subr.mxu0 0.0
        %964 = vmatpush1.msra.mxu0 %v600
        %965 = vmatprep.subr.mxu0 0.0
        %966 = vmatpush1.msra.mxu0 %v601
        %967 = vmatprep.subr.mxu0 0.0
        %968 = vmatpush1.msra.mxu0 %v602
        %969 = vmatprep.subr.mxu0 0.0
        %970 = vmatpush1.msra.mxu0 %v603
        %971 = vmatprep.subr.mxu0 0.0
        %972 = vmatpush1.msra.mxu0 %v604
        %973 = vmatprep.subr.mxu0 0.0
        %974 = vmatpush1.msra.mxu0 0.0
        %975 = vmatprep.subr.mxu0 0.0
        %976 = vmatpush1.msra.mxu0 0.0
        %977 = vmatprep.subr.mxu0 0.0
        %978 = vmatpush1.msra.mxu0 0.0
        %979 = vmatprep.subr.mxu0 0.0
        %980 = vmatpush1.msra.mxu0 0.0
        %981 = vmatprep.subr.mxu0 0.0
        %982 = vmatpush1.msra.mxu0 0.0
        %983 = vmatprep.subr.mxu0 0.0
        %984 = vmatpush1.msra.mxu0 0.0
        %985 = vmatprep.subr.mxu0 0.0
        %986 = vmatpush1.msra.mxu0 0.0
        %987 = vmatprep.subr.mxu0 0.0
        %988 = vmatpush1.msra.mxu0 0.0
        %989 = vmatprep.subr.mxu0 0.0
        %990 = vmatpush1.msra.mxu0 0.0
        %991 = vmatprep.subr.mxu0 0.0
        %992 = vmatpush1.msra.mxu0 0.0
        %993 = vmatprep.subr.mxu0 0.0
        %994 = vmatpush1.msra.mxu0 0.0
        %995 = vmatprep.subr.mxu0 0.0
        %996 = vmatpush1.msra.mxu0 0.0
        %997 = vmatprep.subr.mxu0 0.0
        %998 = vmatpush1.msra.mxu0 0.0
        %999 = vmatprep.subr.mxu0 0.0
        %1000 = vmatpush1.msra.mxu0 0.0
        %1001 = vmatprep.subr.mxu0 0.0
        %1002 = vmatpush1.msra.mxu0 0.0
        %1003 = vmatprep.subr.mxu0 0.0
        %1004 = vmatpush1.msra.mxu0 0.0
        %1005 = vmatprep.mubr.f32.mxu0 0.0
        %1006 = vmatmul.mubr.f32.gmra.mrb[0].mxu0 %v940
        %v1007 = vpop.f32.mrb[0].mxu0
        %v1008 = vadd.f32 0.0, %v1007
        %v1009 = vpop.f32.mrb[0].mxu0
        %1010 = vdwg.mxu0
        %v1011 = vadd.f32 %v787, %v1008
        %v1012 = vadd.f32 %v1011, %v624
        %1013 = vmatprep.subr.mxu0 0.0
        %1014 = vmatpush1.msra.mxu0 %v573
        %1015 = vmatprep.subr.mxu0 0.0
        %1016 = vmatpush1.msra.mxu0 %v574
        %1017 = vmatprep.subr.mxu0 0.0
        %1018 = vmatpush1.msra.mxu0 %v575
        %1019 = vmatprep.subr.mxu0 0.0
        %1020 = vmatpush1.msra.mxu0 %v576
        %1021 = vmatprep.subr.mxu0 0.0
        %1022 = vmatpush1.msra.mxu0 %v577
        %1023 = vmatprep.subr.mxu0 0.0
        %1024 = vmatpush1.msra.mxu0 %v578
        %1025 = vmatprep.subr.mxu0 0.0
        %1026 = vmatpush1.msra.mxu0 %v579
        %1027 = vmatprep.subr.mxu0 0.0
        %1028 = vmatpush1.msra.mxu0 %v580
        %1029 = vmatprep.subr.mxu0 0.0
        %1030 = vmatpush1.msra.mxu0 %v581
        %1031 = vmatprep.subr.mxu0 0.0
        %1032 = vmatpush1.msra.mxu0 %v582
        %1033 = vmatprep.subr.mxu0 0.0
        %1034 = vmatpush1.msra.mxu0 %v583
        %1035 = vmatprep.subr.mxu0 0.0
        %1036 = vmatpush1.msra.mxu0 %v584
        %1037 = vmatprep.subr.mxu0 0.0
        %1038 = vmatpush1.msra.mxu0 %v585
        %1039 = vmatprep.subr.mxu0 0.0
        %1040 = vmatpush1.msra.mxu0 %v586
        %1041 = vmatprep.subr.mxu0 0.0
        %1042 = vmatpush1.msra.mxu0 %v587
        %1043 = vmatprep.subr.mxu0 0.0
        %1044 = vmatpush1.msra.mxu0 %v588
        %1045 = vmatprep.subr.mxu0 0.0
        %1046 = vmatpush1.msra.mxu0 0.0
        %1047 = vmatprep.subr.mxu0 0.0
        %1048 = vmatpush1.msra.mxu0 0.0
        %1049 = vmatprep.subr.mxu0 0.0
        %1050 = vmatpush1.msra.mxu0 0.0
        %1051 = vmatprep.subr.mxu0 0.0
        %1052 = vmatpush1.msra.mxu0 0.0
        %1053 = vmatprep.subr.mxu0 0.0
        %1054 = vmatpush1.msra.mxu0 0.0
        %1055 = vmatprep.subr.mxu0 0.0
        %1056 = vmatpush1.msra.mxu0 0.0
        %1057 = vmatprep.subr.mxu0 0.0
        %1058 = vmatpush1.msra.mxu0 0.0
        %1059 = vmatprep.subr.mxu0 0.0
        %1060 = vmatpush1.msra.mxu0 0.0
        %1061 = vmatprep.subr.mxu0 0.0
        %1062 = vmatpush1.msra.mxu0 0.0
        %1063 = vmatprep.subr.mxu0 0.0
        %1064 = vmatpush1.msra.mxu0 0.0
        %1065 = vmatprep.subr.mxu0 0.0
        %1066 = vmatpush1.msra.mxu0 0.0
        %1067 = vmatprep.subr.mxu0 0.0
        %1068 = vmatpush1.msra.mxu0 0.0
        %1069 = vmatprep.subr.mxu0 0.0
        %1070 = vmatpush1.msra.mxu0 0.0
        %1071 = vmatprep.subr.mxu0 0.0
        %1072 = vmatpush1.msra.mxu0 0.0
        %1073 = vmatprep.subr.mxu0 0.0
        %1074 = vmatpush1.msra.mxu0 0.0
        %1075 = vmatprep.subr.mxu0 0.0
        %1076 = vmatpush1.msra.mxu0 0.0
        %1077 = vmatprep.mubr.f32.mxu0 0.0
        %1078 = vmatmul.mubr.f32.gmra.mrb[0].mxu0 %v940
        %v1079 = vpop.f32.mrb[0].mxu0
        %v1080 = vadd.f32 0.0, %v1079
        %v1081 = vpop.f32.mrb[0].mxu0
        %1082 = vdwg.mxu0
        %v1083 = vadd.f32 %v859, %v1080
        %v1084 = vadd.f32 %v1083, %v617
        %v1085 = vmul.f32 %v1084, 2.2675737e-05
        %s1086 = sadd.s32 %s636, 1
        %s1087 = scalar_lea.vmem %s388, %s1086
        %1088 = vst.msk [vmem:[%s1087] sm:$0x1] %vm862, %v1085
        %v1089 = vlaneseq
        %v1090 = vshrl.u32 %v1089, 7
        %v1091 = vsub.s32 2, %v1090
        %v1092 = vrot.slane %v638, %v1091
        %v1093 = vadd.f32 %v1012, %v1092
        %v1094 = vtanh.pop %v1093
        %1095 = vmatprep.subr.mxu0 0.0
        %1096 = vmatpush1.msra.mxu0 %v557
        %1097 = vmatprep.subr.mxu0 0.0
        %1098 = vmatpush1.msra.mxu0 %v558
        %1099 = vmatprep.subr.mxu0 0.0
        %1100 = vmatpush1.msra.mxu0 %v559
        %1101 = vmatprep.subr.mxu0 0.0
        %1102 = vmatpush1.msra.mxu0 %v560
        %1103 = vmatprep.subr.mxu0 0.0
        %1104 = vmatpush1.msra.mxu0 %v561
        %1105 = vmatprep.subr.mxu0 0.0
        %1106 = vmatpush1.msra.mxu0 %v562
        %1107 = vmatprep.subr.mxu0 0.0
        %1108 = vmatpush1.msra.mxu0 %v563
        %1109 = vmatprep.subr.mxu0 0.0
        %1110 = vmatpush1.msra.mxu0 %v564
        %1111 = vmatprep.subr.mxu0 0.0
        %1112 = vmatpush1.msra.mxu0 %v565
        %1113 = vmatprep.subr.mxu0 0.0
        %1114 = vmatpush1.msra.mxu0 %v566
        %1115 = vmatprep.subr.mxu0 0.0
        %1116 = vmatpush1.msra.mxu0 %v567
        %1117 = vmatprep.subr.mxu0 0.0
        %1118 = vmatpush1.msra.mxu0 %v568
        %1119 = vmatprep.subr.mxu0 0.0
        %1120 = vmatpush1.msra.mxu0 %v569
        %1121 = vmatprep.subr.mxu0 0.0
        %1122 = vmatpush1.msra.mxu0 %v570
        %1123 = vmatprep.subr.mxu0 0.0
        %1124 = vmatpush1.msra.mxu0 %v571
        %1125 = vmatprep.subr.mxu0 0.0
        %1126 = vmatpush1.msra.mxu0 %v572
        %1127 = vmatprep.subr.mxu0 0.0
        %1128 = vmatpush1.msra.mxu0 0.0
        %1129 = vmatprep.subr.mxu0 0.0
        %1130 = vmatpush1.msra.mxu0 0.0
        %1131 = vmatprep.subr.mxu0 0.0
        %1132 = vmatpush1.msra.mxu0 0.0
        %1133 = vmatprep.subr.mxu0 0.0
        %1134 = vmatpush1.msra.mxu0 0.0
        %1135 = vmatprep.subr.mxu0 0.0
        %1136 = vmatpush1.msra.mxu0 0.0
        %1137 = vmatprep.subr.mxu0 0.0
        %1138 = vmatpush1.msra.mxu0 0.0
        %1139 = vmatprep.subr.mxu0 0.0
        %1140 = vmatpush1.msra.mxu0 0.0
        %1141 = vmatprep.subr.mxu0 0.0
        %1142 = vmatpush1.msra.mxu0 0.0
        %1143 = vmatprep.subr.mxu0 0.0
        %1144 = vmatpush1.msra.mxu0 0.0
        %1145 = vmatprep.subr.mxu0 0.0
        %1146 = vmatpush1.msra.mxu0 0.0
        %1147 = vmatprep.subr.mxu0 0.0
        %1148 = vmatpush1.msra.mxu0 0.0
        %1149 = vmatprep.subr.mxu0 0.0
        %1150 = vmatpush1.msra.mxu0 0.0
        %1151 = vmatprep.subr.mxu0 0.0
        %1152 = vmatpush1.msra.mxu0 0.0
        %1153 = vmatprep.subr.mxu0 0.0
        %1154 = vmatpush1.msra.mxu0 0.0
        %1155 = vmatprep.subr.mxu0 0.0
        %1156 = vmatpush1.msra.mxu0 0.0
        %1157 = vmatprep.subr.mxu0 0.0
        %1158 = vmatpush1.msra.mxu0 0.0
        %1159 = vmatprep.mubr.f32.mxu0 0.0
        %1160 = vmatmul.mubr.f32.gmra.mrb[0].mxu0 %v1094
        %v1161 = vpop.f32.mrb[0].mxu0
        %v1162 = vadd.f32 %v610, %v1161
        %v1163 = vpop.f32.mrb[0].mxu0
        %1164 = vdwg.mxu0
        %v1165 = vtanh.pop %v1162
        %1166 = vmatprep.subr.mxu0 0.0
        %1167 = vmatpush1.msra.mxu0 %v589
        %1168 = vmatprep.subr.mxu0 0.0
        %1169 = vmatpush1.msra.mxu0 %v590
        %1170 = vmatprep.subr.mxu0 0.0
        %1171 = vmatpush1.msra.mxu0 %v591
        %1172 = vmatprep.subr.mxu0 0.0
        %1173 = vmatpush1.msra.mxu0 %v592
        %1174 = vmatprep.subr.mxu0 0.0
        %1175 = vmatpush1.msra.mxu0 %v593
        %1176 = vmatprep.subr.mxu0 0.0
        %1177 = vmatpush1.msra.mxu0 %v594
        %1178 = vmatprep.subr.mxu0 0.0
        %1179 = vmatpush1.msra.mxu0 %v595
        %1180 = vmatprep.subr.mxu0 0.0
        %1181 = vmatpush1.msra.mxu0 %v596
        %1182 = vmatprep.subr.mxu0 0.0
        %1183 = vmatpush1.msra.mxu0 %v597
        %1184 = vmatprep.subr.mxu0 0.0
        %1185 = vmatpush1.msra.mxu0 %v598
        %1186 = vmatprep.subr.mxu0 0.0
        %1187 = vmatpush1.msra.mxu0 %v599
        %1188 = vmatprep.subr.mxu0 0.0
        %1189 = vmatpush1.msra.mxu0 %v600
        %1190 = vmatprep.subr.mxu0 0.0
        %1191 = vmatpush1.msra.mxu0 %v601
        %1192 = vmatprep.subr.mxu0 0.0
        %1193 = vmatpush1.msra.mxu0 %v602
        %1194 = vmatprep.subr.mxu0 0.0
        %1195 = vmatpush1.msra.mxu0 %v603
        %1196 = vmatprep.subr.mxu0 0.0
        %1197 = vmatpush1.msra.mxu0 %v604
        %1198 = vmatprep.subr.mxu0 0.0
        %1199 = vmatpush1.msra.mxu0 0.0
        %1200 = vmatprep.subr.mxu0 0.0
        %1201 = vmatpush1.msra.mxu0 0.0
        %1202 = vmatprep.subr.mxu0 0.0
        %1203 = vmatpush1.msra.mxu0 0.0
        %1204 = vmatprep.subr.mxu0 0.0
        %1205 = vmatpush1.msra.mxu0 0.0
        %1206 = vmatprep.subr.mxu0 0.0
        %1207 = vmatpush1.msra.mxu0 0.0
        %1208 = vmatprep.subr.mxu0 0.0
        %1209 = vmatpush1.msra.mxu0 0.0
        %1210 = vmatprep.subr.mxu0 0.0
        %1211 = vmatpush1.msra.mxu0 0.0
        %1212 = vmatprep.subr.mxu0 0.0
        %1213 = vmatpush1.msra.mxu0 0.0
        %1214 = vmatprep.subr.mxu0 0.0
        %1215 = vmatpush1.msra.mxu0 0.0
        %1216 = vmatprep.subr.mxu0 0.0
        %1217 = vmatpush1.msra.mxu0 0.0
        %1218 = vmatprep.subr.mxu0 0.0
        %1219 = vmatpush1.msra.mxu0 0.0
        %1220 = vmatprep.subr.mxu0 0.0
        %1221 = vmatpush1.msra.mxu0 0.0
        %1222 = vmatprep.subr.mxu0 0.0
        %1223 = vmatpush1.msra.mxu0 0.0
        %1224 = vmatprep.subr.mxu0 0.0
        %1225 = vmatpush1.msra.mxu0 0.0
        %1226 = vmatprep.subr.mxu0 0.0
        %1227 = vmatpush1.msra.mxu0 0.0
        %1228 = vmatprep.subr.mxu0 0.0
        %1229 = vmatpush1.msra.mxu0 0.0
        %1230 = vmatprep.mubr.f32.mxu0 0.0
        %1231 = vmatmul.mubr.f32.gmra.mrb[0].mxu0 %v1165
        %v1232 = vpop.f32.mrb[0].mxu0
        %v1233 = vadd.f32 0.0, %v1232
        %v1234 = vpop.f32.mrb[0].mxu0
        %1235 = vdwg.mxu0
        %v1236 = vadd.f32 %v1012, %v1233
        %v1237 = vadd.f32 %v1236, %v624
        %1238 = vmatprep.subr.mxu0 0.0
        %1239 = vmatpush1.msra.mxu0 %v573
        %1240 = vmatprep.subr.mxu0 0.0
        %1241 = vmatpush1.msra.mxu0 %v574
        %1242 = vmatprep.subr.mxu0 0.0
        %1243 = vmatpush1.msra.mxu0 %v575
        %1244 = vmatprep.subr.mxu0 0.0
        %1245 = vmatpush1.msra.mxu0 %v576
        %1246 = vmatprep.subr.mxu0 0.0
        %1247 = vmatpush1.msra.mxu0 %v577
        %1248 = vmatprep.subr.mxu0 0.0
        %1249 = vmatpush1.msra.mxu0 %v578
        %1250 = vmatprep.subr.mxu0 0.0
        %1251 = vmatpush1.msra.mxu0 %v579
        %1252 = vmatprep.subr.mxu0 0.0
        %1253 = vmatpush1.msra.mxu0 %v580
        %1254 = vmatprep.subr.mxu0 0.0
        %1255 = vmatpush1.msra.mxu0 %v581
        %1256 = vmatprep.subr.mxu0 0.0
        %1257 = vmatpush1.msra.mxu0 %v582
        %1258 = vmatprep.subr.mxu0 0.0
        %1259 = vmatpush1.msra.mxu0 %v583
        %1260 = vmatprep.subr.mxu0 0.0
        %1261 = vmatpush1.msra.mxu0 %v584
        %1262 = vmatprep.subr.mxu0 0.0
        %1263 = vmatpush1.msra.mxu0 %v585
        %1264 = vmatprep.subr.mxu0 0.0
        %1265 = vmatpush1.msra.mxu0 %v586
        %1266 = vmatprep.subr.mxu0 0.0
        %1267 = vmatpush1.msra.mxu0 %v587
        %1268 = vmatprep.subr.mxu0 0.0
        %1269 = vmatpush1.msra.mxu0 %v588
        %1270 = vmatprep.subr.mxu0 0.0
        %1271 = vmatpush1.msra.mxu0 0.0
        %1272 = vmatprep.subr.mxu0 0.0
        %1273 = vmatpush1.msra.mxu0 0.0
        %1274 = vmatprep.subr.mxu0 0.0
        %1275 = vmatpush1.msra.mxu0 0.0
        %1276 = vmatprep.subr.mxu0 0.0
        %1277 = vmatpush1.msra.mxu0 0.0
        %1278 = vmatprep.subr.mxu0 0.0
        %1279 = vmatpush1.msra.mxu0 0.0
        %1280 = vmatprep.subr.mxu0 0.0
        %1281 = vmatpush1.msra.mxu0 0.0
        %1282 = vmatprep.subr.mxu0 0.0
        %1283 = vmatpush1.msra.mxu0 0.0
        %1284 = vmatprep.subr.mxu0 0.0
        %1285 = vmatpush1.msra.mxu0 0.0
        %1286 = vmatprep.subr.mxu0 0.0
        %1287 = vmatpush1.msra.mxu0 0.0
        %1288 = vmatprep.subr.mxu0 0.0
        %1289 = vmatpush1.msra.mxu0 0.0
        %1290 = vmatprep.subr.mxu0 0.0
        %1291 = vmatpush1.msra.mxu0 0.0
        %1292 = vmatprep.subr.mxu0 0.0
        %1293 = vmatpush1.msra.mxu0 0.0
        %1294 = vmatprep.subr.mxu0 0.0
        %1295 = vmatpush1.msra.mxu0 0.0
        %1296 = vmatprep.subr.mxu0 0.0
        %1297 = vmatpush1.msra.mxu0 0.0
        %1298 = vmatprep.subr.mxu0 0.0
        %1299 = vmatpush1.msra.mxu0 0.0
        %1300 = vmatprep.subr.mxu0 0.0
        %1301 = vmatpush1.msra.mxu0 0.0
        %1302 = vmatprep.mubr.f32.mxu0 0.0
        %1303 = vmatmul.mubr.f32.gmra.mrb[0].mxu0 %v1165
        %v1304 = vpop.f32.mrb[0].mxu0
        %v1305 = vadd.f32 0.0, %v1304
        %v1306 = vpop.f32.mrb[0].mxu0
        %1307 = vdwg.mxu0
        %v1308 = vadd.f32 %v1084, %v1305
        %v1309 = vadd.f32 %v1308, %v617
        %v1310 = vmul.f32 %v1309, 2.2675737e-05
        %s1311 = sadd.s32 %s636, 2
        %s1312 = scalar_lea.vmem %s388, %s1311
        %1313 = vst.msk [vmem:[%s1312] sm:$0x1] %vm862, %v1310
        %v1314 = vlaneseq
        %v1315 = vshrl.u32 %v1314, 7
        %v1316 = vsub.s32 3, %v1315
        %v1317 = vrot.slane %v638, %v1316
        %v1318 = vadd.f32 %v1237, %v1317
        %v1319 = vtanh.pop %v1318
        %1320 = vmatprep.subr.mxu0 0.0
        %1321 = vmatpush1.msra.mxu0 %v557
        %1322 = vmatprep.subr.mxu0 0.0
        %1323 = vmatpush1.msra.mxu0 %v558
        %1324 = vmatprep.subr.mxu0 0.0
        %1325 = vmatpush1.msra.mxu0 %v559
        %1326 = vmatprep.subr.mxu0 0.0
        %1327 = vmatpush1.msra.mxu0 %v560
        %1328 = vmatprep.subr.mxu0 0.0
        %1329 = vmatpush1.msra.mxu0 %v561
        %1330 = vmatprep.subr.mxu0 0.0
        %1331 = vmatpush1.msra.mxu0 %v562
        %1332 = vmatprep.subr.mxu0 0.0
        %1333 = vmatpush1.msra.mxu0 %v563
        %1334 = vmatprep.subr.mxu0 0.0
        %1335 = vmatpush1.msra.mxu0 %v564
        %1336 = vmatprep.subr.mxu0 0.0
        %1337 = vmatpush1.msra.mxu0 %v565
        %1338 = vmatprep.subr.mxu0 0.0
        %1339 = vmatpush1.msra.mxu0 %v566
        %1340 = vmatprep.subr.mxu0 0.0
        %1341 = vmatpush1.msra.mxu0 %v567
        %1342 = vmatprep.subr.mxu0 0.0
        %1343 = vmatpush1.msra.mxu0 %v568
        %1344 = vmatprep.subr.mxu0 0.0
        %1345 = vmatpush1.msra.mxu0 %v569
        %1346 = vmatprep.subr.mxu0 0.0
        %1347 = vmatpush1.msra.mxu0 %v570
        %1348 = vmatprep.subr.mxu0 0.0
        %1349 = vmatpush1.msra.mxu0 %v571
        %1350 = vmatprep.subr.mxu0 0.0
        %1351 = vmatpush1.msra.mxu0 %v572
        %1352 = vmatprep.subr.mxu0 0.0
        %1353 = vmatpush1.msra.mxu0 0.0
        %1354 = vmatprep.subr.mxu0 0.0
        %1355 = vmatpush1.msra.mxu0 0.0
        %1356 = vmatprep.subr.mxu0 0.0
        %1357 = vmatpush1.msra.mxu0 0.0
        %1358 = vmatprep.subr.mxu0 0.0
        %1359 = vmatpush1.msra.mxu0 0.0
        %1360 = vmatprep.subr.mxu0 0.0
        %1361 = vmatpush1.msra.mxu0 0.0
        %1362 = vmatprep.subr.mxu0 0.0
        %1363 = vmatpush1.msra.mxu0 0.0
        %1364 = vmatprep.subr.mxu0 0.0
        %1365 = vmatpush1.msra.mxu0 0.0
        %1366 = vmatprep.subr.mxu0 0.0
        %1367 = vmatpush1.msra.mxu0 0.0
        %1368 = vmatprep.subr.mxu0 0.0
        %1369 = vmatpush1.msra.mxu0 0.0
        %1370 = vmatprep.subr.mxu0 0.0
        %1371 = vmatpush1.msra.mxu0 0.0
        %1372 = vmatprep.subr.mxu0 0.0
        %1373 = vmatpush1.msra.mxu0 0.0
        %1374 = vmatprep.subr.mxu0 0.0
        %1375 = vmatpush1.msra.mxu0 0.0
        %1376 = vmatprep.subr.mxu0 0.0
        %1377 = vmatpush1.msra.mxu0 0.0
        %1378 = vmatprep.subr.mxu0 0.0
        %1379 = vmatpush1.msra.mxu0 0.0
        %1380 = vmatprep.subr.mxu0 0.0
        %1381 = vmatpush1.msra.mxu0 0.0
        %1382 = vmatprep.subr.mxu0 0.0
        %1383 = vmatpush1.msra.mxu0 0.0
        %1384 = vmatprep.mubr.f32.mxu0 0.0
        %1385 = vmatmul.mubr.f32.gmra.mrb[0].mxu0 %v1319
        %v1386 = vpop.f32.mrb[0].mxu0
        %v1387 = vadd.f32 %v610, %v1386
        %v1388 = vpop.f32.mrb[0].mxu0
        %1389 = vdwg.mxu0
        %v1390 = vtanh.pop %v1387
        %1391 = vmatprep.subr.mxu0 0.0
        %1392 = vmatpush1.msra.mxu0 %v589
        %1393 = vmatprep.subr.mxu0 0.0
        %1394 = vmatpush1.msra.mxu0 %v590
        %1395 = vmatprep.subr.mxu0 0.0
        %1396 = vmatpush1.msra.mxu0 %v591
        %1397 = vmatprep.subr.mxu0 0.0
        %1398 = vmatpush1.msra.mxu0 %v592
        %1399 = vmatprep.subr.mxu0 0.0
        %1400 = vmatpush1.msra.mxu0 %v593
        %1401 = vmatprep.subr.mxu0 0.0
        %1402 = vmatpush1.msra.mxu0 %v594
        %1403 = vmatprep.subr.mxu0 0.0
        %1404 = vmatpush1.msra.mxu0 %v595
        %1405 = vmatprep.subr.mxu0 0.0
        %1406 = vmatpush1.msra.mxu0 %v596
        %1407 = vmatprep.subr.mxu0 0.0
        %1408 = vmatpush1.msra.mxu0 %v597
        %1409 = vmatprep.subr.mxu0 0.0
        %1410 = vmatpush1.msra.mxu0 %v598
        %1411 = vmatprep.subr.mxu0 0.0
        %1412 = vmatpush1.msra.mxu0 %v599
        %1413 = vmatprep.subr.mxu0 0.0
        %1414 = vmatpush1.msra.mxu0 %v600
        %1415 = vmatprep.subr.mxu0 0.0
        %1416 = vmatpush1.msra.mxu0 %v601
        %1417 = vmatprep.subr.mxu0 0.0
        %1418 = vmatpush1.msra.mxu0 %v602
        %1419 = vmatprep.subr.mxu0 0.0
        %1420 = vmatpush1.msra.mxu0 %v603
        %1421 = vmatprep.subr.mxu0 0.0
        %1422 = vmatpush1.msra.mxu0 %v604
        %1423 = vmatprep.subr.mxu0 0.0
        %1424 = vmatpush1.msra.mxu0 0.0
        %1425 = vmatprep.subr.mxu0 0.0
        %1426 = vmatpush1.msra.mxu0 0.0
        %1427 = vmatprep.subr.mxu0 0.0
        %1428 = vmatpush1.msra.mxu0 0.0
        %1429 = vmatprep.subr.mxu0 0.0
        %1430 = vmatpush1.msra.mxu0 0.0
        %1431 = vmatprep.subr.mxu0 0.0
        %1432 = vmatpush1.msra.mxu0 0.0
        %1433 = vmatprep.subr.mxu0 0.0
        %1434 = vmatpush1.msra.mxu0 0.0
        %1435 = vmatprep.subr.mxu0 0.0
        %1436 = vmatpush1.msra.mxu0 0.0
        %1437 = vmatprep.subr.mxu0 0.0
        %1438 = vmatpush1.msra.mxu0 0.0
        %1439 = vmatprep.subr.mxu0 0.0
        %1440 = vmatpush1.msra.mxu0 0.0
        %1441 = vmatprep.subr.mxu0 0.0
        %1442 = vmatpush1.msra.mxu0 0.0
        %1443 = vmatprep.subr.mxu0 0.0
        %1444 = vmatpush1.msra.mxu0 0.0
        %1445 = vmatprep.subr.mxu0 0.0
        %1446 = vmatpush1.msra.mxu0 0.0
        %1447 = vmatprep.subr.mxu0 0.0
        %1448 = vmatpush1.msra.mxu0 0.0
        %1449 = vmatprep.subr.mxu0 0.0
        %1450 = vmatpush1.msra.mxu0 0.0
        %1451 = vmatprep.subr.mxu0 0.0
        %1452 = vmatpush1.msra.mxu0 0.0
        %1453 = vmatprep.subr.mxu0 0.0
        %1454 = vmatpush1.msra.mxu0 0.0
        %1455 = vmatprep.mubr.f32.mxu0 0.0
        %1456 = vmatmul.mubr.f32.gmra.mrb[0].mxu0 %v1390
        %v1457 = vpop.f32.mrb[0].mxu0
        %v1458 = vadd.f32 0.0, %v1457
        %v1459 = vpop.f32.mrb[0].mxu0
        %1460 = vdwg.mxu0
        %v1461 = vadd.f32 %v1237, %v1458
        %v1462 = vadd.f32 %v1461, %v624
        %1463 = vmatprep.subr.mxu0 0.0
        %1464 = vmatpush1.msra.mxu0 %v573
        %1465 = vmatprep.subr.mxu0 0.0
        %1466 = vmatpush1.msra.mxu0 %v574
        %1467 = vmatprep.subr.mxu0 0.0
        %1468 = vmatpush1.msra.mxu0 %v575
        %1469 = vmatprep.subr.mxu0 0.0
        %1470 = vmatpush1.msra.mxu0 %v576
        %1471 = vmatprep.subr.mxu0 0.0
        %1472 = vmatpush1.msra.mxu0 %v577
        %1473 = vmatprep.subr.mxu0 0.0
        %1474 = vmatpush1.msra.mxu0 %v578
        %1475 = vmatprep.subr.mxu0 0.0
        %1476 = vmatpush1.msra.mxu0 %v579
        %1477 = vmatprep.subr.mxu0 0.0
        %1478 = vmatpush1.msra.mxu0 %v580
        %1479 = vmatprep.subr.mxu0 0.0
        %1480 = vmatpush1.msra.mxu0 %v581
        %1481 = vmatprep.subr.mxu0 0.0
        %1482 = vmatpush1.msra.mxu0 %v582
        %1483 = vmatprep.subr.mxu0 0.0
        %1484 = vmatpush1.msra.mxu0 %v583
        %1485 = vmatprep.subr.mxu0 0.0
        %1486 = vmatpush1.msra.mxu0 %v584
        %1487 = vmatprep.subr.mxu0 0.0
        %1488 = vmatpush1.msra.mxu0 %v585
        %1489 = vmatprep.subr.mxu0 0.0
        %1490 = vmatpush1.msra.mxu0 %v586
        %1491 = vmatprep.subr.mxu0 0.0
        %1492 = vmatpush1.msra.mxu0 %v587
        %1493 = vmatprep.subr.mxu0 0.0
        %1494 = vmatpush1.msra.mxu0 %v588
        %1495 = vmatprep.subr.mxu0 0.0
        %1496 = vmatpush1.msra.mxu0 0.0
        %1497 = vmatprep.subr.mxu0 0.0
        %1498 = vmatpush1.msra.mxu0 0.0
        %1499 = vmatprep.subr.mxu0 0.0
        %1500 = vmatpush1.msra.mxu0 0.0
        %1501 = vmatprep.subr.mxu0 0.0
        %1502 = vmatpush1.msra.mxu0 0.0
        %1503 = vmatprep.subr.mxu0 0.0
        %1504 = vmatpush1.msra.mxu0 0.0
        %1505 = vmatprep.subr.mxu0 0.0
        %1506 = vmatpush1.msra.mxu0 0.0
        %1507 = vmatprep.subr.mxu0 0.0
        %1508 = vmatpush1.msra.mxu0 0.0
        %1509 = vmatprep.subr.mxu0 0.0
        %1510 = vmatpush1.msra.mxu0 0.0
        %1511 = vmatprep.subr.mxu0 0.0
        %1512 = vmatpush1.msra.mxu0 0.0
        %1513 = vmatprep.subr.mxu0 0.0
        %1514 = vmatpush1.msra.mxu0 0.0
        %1515 = vmatprep.subr.mxu0 0.0
        %1516 = vmatpush1.msra.mxu0 0.0
        %1517 = vmatprep.subr.mxu0 0.0
        %1518 = vmatpush1.msra.mxu0 0.0
        %1519 = vmatprep.subr.mxu0 0.0
        %1520 = vmatpush1.msra.mxu0 0.0
        %1521 = vmatprep.subr.mxu0 0.0
        %1522 = vmatpush1.msra.mxu0 0.0
        %1523 = vmatprep.subr.mxu0 0.0
        %1524 = vmatpush1.msra.mxu0 0.0
        %1525 = vmatprep.subr.mxu0 0.0
        %1526 = vmatpush1.msra.mxu0 0.0
        %1527 = vmatprep.mubr.f32.mxu0 0.0
        %1528 = vmatmul.mubr.f32.gmra.mrb[0].mxu0 %v1390
        %v1529 = vpop.f32.mrb[0].mxu0
        %v1530 = vadd.f32 0.0, %v1529
        %v1531 = vpop.f32.mrb[0].mxu0
        %1532 = vdwg.mxu0
        %v1533 = vadd.f32 %v1309, %v1530
        %v1534 = vadd.f32 %v1533, %v617
        %v1535 = vmul.f32 %v1534, 2.2675737e-05
        %s1536 = sadd.s32 %s636, 3
        %s1537 = scalar_lea.vmem %s388, %s1536
        %1538 = vst.msk [vmem:[%s1537] sm:$0x1] %vm862, %v1535
        %v1539 = vlaneseq
        %v1540 = vshrl.u32 %v1539, 7
        %v1541 = vsub.s32 4, %v1540
        %v1542 = vrot.slane %v638, %v1541
        %v1543 = vadd.f32 %v1462, %v1542
        %v1544 = vtanh.pop %v1543
        %1545 = vmatprep.subr.mxu0 0.0
        %1546 = vmatpush1.msra.mxu0 %v557
        %1547 = vmatprep.subr.mxu0 0.0
        %1548 = vmatpush1.msra.mxu0 %v558
        %1549 = vmatprep.subr.mxu0 0.0
        %1550 = vmatpush1.msra.mxu0 %v559
        %1551 = vmatprep.subr.mxu0 0.0
        %1552 = vmatpush1.msra.mxu0 %v560
        %1553 = vmatprep.subr.mxu0 0.0
        %1554 = vmatpush1.msra.mxu0 %v561
        %1555 = vmatprep.subr.mxu0 0.0
        %1556 = vmatpush1.msra.mxu0 %v562
        %1557 = vmatprep.subr.mxu0 0.0
        %1558 = vmatpush1.msra.mxu0 %v563
        %1559 = vmatprep.subr.mxu0 0.0
        %1560 = vmatpush1.msra.mxu0 %v564
        %1561 = vmatprep.subr.mxu0 0.0
        %1562 = vmatpush1.msra.mxu0 %v565
        %1563 = vmatprep.subr.mxu0 0.0
        %1564 = vmatpush1.msra.mxu0 %v566
        %1565 = vmatprep.subr.mxu0 0.0
        %1566 = vmatpush1.msra.mxu0 %v567
        %1567 = vmatprep.subr.mxu0 0.0
        %1568 = vmatpush1.msra.mxu0 %v568
        %1569 = vmatprep.subr.mxu0 0.0
        %1570 = vmatpush1.msra.mxu0 %v569
        %1571 = vmatprep.subr.mxu0 0.0
        %1572 = vmatpush1.msra.mxu0 %v570
        %1573 = vmatprep.subr.mxu0 0.0
        %1574 = vmatpush1.msra.mxu0 %v571
        %1575 = vmatprep.subr.mxu0 0.0
        %1576 = vmatpush1.msra.mxu0 %v572
        %1577 = vmatprep.subr.mxu0 0.0
        %1578 = vmatpush1.msra.mxu0 0.0
        %1579 = vmatprep.subr.mxu0 0.0
        %1580 = vmatpush1.msra.mxu0 0.0
        %1581 = vmatprep.subr.mxu0 0.0
        %1582 = vmatpush1.msra.mxu0 0.0
        %1583 = vmatprep.subr.mxu0 0.0
        %1584 = vmatpush1.msra.mxu0 0.0
        %1585 = vmatprep.subr.mxu0 0.0
        %1586 = vmatpush1.msra.mxu0 0.0
        %1587 = vmatprep.subr.mxu0 0.0
        %1588 = vmatpush1.msra.mxu0 0.0
        %1589 = vmatprep.subr.mxu0 0.0
        %1590 = vmatpush1.msra.mxu0 0.0
        %1591 = vmatprep.subr.mxu0 0.0
        %1592 = vmatpush1.msra.mxu0 0.0
        %1593 = vmatprep.subr.mxu0 0.0
        %1594 = vmatpush1.msra.mxu0 0.0
        %1595 = vmatprep.subr.mxu0 0.0
        %1596 = vmatpush1.msra.mxu0 0.0
        %1597 = vmatprep.subr.mxu0 0.0
        %1598 = vmatpush1.msra.mxu0 0.0
        %1599 = vmatprep.subr.mxu0 0.0
        %1600 = vmatpush1.msra.mxu0 0.0
        %1601 = vmatprep.subr.mxu0 0.0
        %1602 = vmatpush1.msra.mxu0 0.0
        %1603 = vmatprep.subr.mxu0 0.0
        %1604 = vmatpush1.msra.mxu0 0.0
        %1605 = vmatprep.subr.mxu0 0.0
        %1606 = vmatpush1.msra.mxu0 0.0
        %1607 = vmatprep.subr.mxu0 0.0
        %1608 = vmatpush1.msra.mxu0 0.0
        %1609 = vmatprep.mubr.f32.mxu0 0.0
        %1610 = vmatmul.mubr.f32.gmra.mrb[0].mxu0 %v1544
        %v1611 = vpop.f32.mrb[0].mxu0
        %v1612 = vadd.f32 %v610, %v1611
        %v1613 = vpop.f32.mrb[0].mxu0
        %1614 = vdwg.mxu0
        %v1615 = vtanh.pop %v1612
        %1616 = vmatprep.subr.mxu0 0.0
        %1617 = vmatpush1.msra.mxu0 %v589
        %1618 = vmatprep.subr.mxu0 0.0
        %1619 = vmatpush1.msra.mxu0 %v590
        %1620 = vmatprep.subr.mxu0 0.0
        %1621 = vmatpush1.msra.mxu0 %v591
        %1622 = vmatprep.subr.mxu0 0.0
        %1623 = vmatpush1.msra.mxu0 %v592
        %1624 = vmatprep.subr.mxu0 0.0
        %1625 = vmatpush1.msra.mxu0 %v593
        %1626 = vmatprep.subr.mxu0 0.0
        %1627 = vmatpush1.msra.mxu0 %v594
        %1628 = vmatprep.subr.mxu0 0.0
        %1629 = vmatpush1.msra.mxu0 %v595
        %1630 = vmatprep.subr.mxu0 0.0
        %1631 = vmatpush1.msra.mxu0 %v596
        %1632 = vmatprep.subr.mxu0 0.0
        %1633 = vmatpush1.msra.mxu0 %v597
        %1634 = vmatprep.subr.mxu0 0.0
        %1635 = vmatpush1.msra.mxu0 %v598
        %1636 = vmatprep.subr.mxu0 0.0
        %1637 = vmatpush1.msra.mxu0 %v599
        %1638 = vmatprep.subr.mxu0 0.0
        %1639 = vmatpush1.msra.mxu0 %v600
        %1640 = vmatprep.subr.mxu0 0.0
        %1641 = vmatpush1.msra.mxu0 %v601
        %1642 = vmatprep.subr.mxu0 0.0
        %1643 = vmatpush1.msra.mxu0 %v602
        %1644 = vmatprep.subr.mxu0 0.0
        %1645 = vmatpush1.msra.mxu0 %v603
        %1646 = vmatprep.subr.mxu0 0.0
        %1647 = vmatpush1.msra.mxu0 %v604
        %1648 = vmatprep.subr.mxu0 0.0
        %1649 = vmatpush1.msra.mxu0 0.0
        %1650 = vmatprep.subr.mxu0 0.0
        %1651 = vmatpush1.msra.mxu0 0.0
        %1652 = vmatprep.subr.mxu0 0.0
        %1653 = vmatpush1.msra.mxu0 0.0
        %1654 = vmatprep.subr.mxu0 0.0
        %1655 = vmatpush1.msra.mxu0 0.0
        %1656 = vmatprep.subr.mxu0 0.0
        %1657 = vmatpush1.msra.mxu0 0.0
        %1658 = vmatprep.subr.mxu0 0.0
        %1659 = vmatpush1.msra.mxu0 0.0
        %1660 = vmatprep.subr.mxu0 0.0
        %1661 = vmatpush1.msra.mxu0 0.0
        %1662 = vmatprep.subr.mxu0 0.0
        %1663 = vmatpush1.msra.mxu0 0.0
        %1664 = vmatprep.subr.mxu0 0.0
        %1665 = vmatpush1.msra.mxu0 0.0
        %1666 = vmatprep.subr.mxu0 0.0
        %1667 = vmatpush1.msra.mxu0 0.0
        %1668 = vmatprep.subr.mxu0 0.0
        %1669 = vmatpush1.msra.mxu0 0.0
        %1670 = vmatprep.subr.mxu0 0.0
        %1671 = vmatpush1.msra.mxu0 0.0
        %1672 = vmatprep.subr.mxu0 0.0
        %1673 = vmatpush1.msra.mxu0 0.0
        %1674 = vmatprep.subr.mxu0 0.0
        %1675 = vmatpush1.msra.mxu0 0.0
        %1676 = vmatprep.subr.mxu0 0.0
        %1677 = vmatpush1.msra.mxu0 0.0
        %1678 = vmatprep.subr.mxu0 0.0
        %1679 = vmatpush1.msra.mxu0 0.0
        %1680 = vmatprep.mubr.f32.mxu0 0.0
        %1681 = vmatmul.mubr.f32.gmra.mrb[0].mxu0 %v1615
        %v1682 = vpop.f32.mrb[0].mxu0
        %v1683 = vadd.f32 0.0, %v1682
        %v1684 = vpop.f32.mrb[0].mxu0
        %1685 = vdwg.mxu0
        %v1686 = vadd.f32 %v1462, %v1683
        %v1687 = vadd.f32 %v1686, %v624
        %1688 = vmatprep.subr.mxu0 0.0
        %1689 = vmatpush1.msra.mxu0 %v573
        %1690 = vmatprep.subr.mxu0 0.0
        %1691 = vmatpush1.msra.mxu0 %v574
        %1692 = vmatprep.subr.mxu0 0.0
        %1693 = vmatpush1.msra.mxu0 %v575
        %1694 = vmatprep.subr.mxu0 0.0
        %1695 = vmatpush1.msra.mxu0 %v576
        %1696 = vmatprep.subr.mxu0 0.0
        %1697 = vmatpush1.msra.mxu0 %v577
        %1698 = vmatprep.subr.mxu0 0.0
        %1699 = vmatpush1.msra.mxu0 %v578
        %1700 = vmatprep.subr.mxu0 0.0
        %1701 = vmatpush1.msra.mxu0 %v579
        %1702 = vmatprep.subr.mxu0 0.0
        %1703 = vmatpush1.msra.mxu0 %v580
        %1704 = vmatprep.subr.mxu0 0.0
        %1705 = vmatpush1.msra.mxu0 %v581
        %1706 = vmatprep.subr.mxu0 0.0
        %1707 = vmatpush1.msra.mxu0 %v582
        %1708 = vmatprep.subr.mxu0 0.0
        %1709 = vmatpush1.msra.mxu0 %v583
        %1710 = vmatprep.subr.mxu0 0.0
        %1711 = vmatpush1.msra.mxu0 %v584
        %1712 = vmatprep.subr.mxu0 0.0
        %1713 = vmatpush1.msra.mxu0 %v585
        %1714 = vmatprep.subr.mxu0 0.0
        %1715 = vmatpush1.msra.mxu0 %v586
        %1716 = vmatprep.subr.mxu0 0.0
        %1717 = vmatpush1.msra.mxu0 %v587
        %1718 = vmatprep.subr.mxu0 0.0
        %1719 = vmatpush1.msra.mxu0 %v588
        %1720 = vmatprep.subr.mxu0 0.0
        %1721 = vmatpush1.msra.mxu0 0.0
        %1722 = vmatprep.subr.mxu0 0.0
        %1723 = vmatpush1.msra.mxu0 0.0
        %1724 = vmatprep.subr.mxu0 0.0
        %1725 = vmatpush1.msra.mxu0 0.0
        %1726 = vmatprep.subr.mxu0 0.0
        %1727 = vmatpush1.msra.mxu0 0.0
        %1728 = vmatprep.subr.mxu0 0.0
        %1729 = vmatpush1.msra.mxu0 0.0
        %1730 = vmatprep.subr.mxu0 0.0
        %1731 = vmatpush1.msra.mxu0 0.0
        %1732 = vmatprep.subr.mxu0 0.0
        %1733 = vmatpush1.msra.mxu0 0.0
        %1734 = vmatprep.subr.mxu0 0.0
        %1735 = vmatpush1.msra.mxu0 0.0
        %1736 = vmatprep.subr.mxu0 0.0
        %1737 = vmatpush1.msra.mxu0 0.0
        %1738 = vmatprep.subr.mxu0 0.0
        %1739 = vmatpush1.msra.mxu0 0.0
        %1740 = vmatprep.subr.mxu0 0.0
        %1741 = vmatpush1.msra.mxu0 0.0
        %1742 = vmatprep.subr.mxu0 0.0
        %1743 = vmatpush1.msra.mxu0 0.0
        %1744 = vmatprep.subr.mxu0 0.0
        %1745 = vmatpush1.msra.mxu0 0.0
        %1746 = vmatprep.subr.mxu0 0.0
        %1747 = vmatpush1.msra.mxu0 0.0
        %1748 = vmatprep.subr.mxu0 0.0
        %1749 = vmatpush1.msra.mxu0 0.0
        %1750 = vmatprep.subr.mxu0 0.0
        %1751 = vmatpush1.msra.mxu0 0.0
        %1752 = vmatprep.mubr.f32.mxu0 0.0
        %1753 = vmatmul.mubr.f32.gmra.mrb[0].mxu0 %v1615
        %v1754 = vpop.f32.mrb[0].mxu0
        %v1755 = vadd.f32 0.0, %v1754
        %v1756 = vpop.f32.mrb[0].mxu0
        %1757 = vdwg.mxu0
        %v1758 = vadd.f32 %v1534, %v1755
        %v1759 = vadd.f32 %v1758, %v617
        %v1760 = vmul.f32 %v1759, 2.2675737e-05
        %s1761 = sadd.s32 %s636, 4
        %s1762 = scalar_lea.vmem %s388, %s1761
        %1763 = vst.msk [vmem:[%s1762] sm:$0x1] %vm862, %v1760
        %v1764 = vlaneseq
        %v1765 = vshrl.u32 %v1764, 7
        %v1766 = vsub.s32 5, %v1765
        %v1767 = vrot.slane %v638, %v1766
        %v1768 = vadd.f32 %v1687, %v1767
        %v1769 = vtanh.pop %v1768
        %1770 = vmatprep.subr.mxu0 0.0
        %1771 = vmatpush1.msra.mxu0 %v557
        %1772 = vmatprep.subr.mxu0 0.0
        %1773 = vmatpush1.msra.mxu0 %v558
        %1774 = vmatprep.subr.mxu0 0.0
        %1775 = vmatpush1.msra.mxu0 %v559
        %1776 = vmatprep.subr.mxu0 0.0
        %1777 = vmatpush1.msra.mxu0 %v560
        %1778 = vmatprep.subr.mxu0 0.0
        %1779 = vmatpush1.msra.mxu0 %v561
        %1780 = vmatprep.subr.mxu0 0.0
        %1781 = vmatpush1.msra.mxu0 %v562
        %1782 = vmatprep.subr.mxu0 0.0
        %1783 = vmatpush1.msra.mxu0 %v563
        %1784 = vmatprep.subr.mxu0 0.0
        %1785 = vmatpush1.msra.mxu0 %v564
        %1786 = vmatprep.subr.mxu0 0.0
        %1787 = vmatpush1.msra.mxu0 %v565
        %1788 = vmatprep.subr.mxu0 0.0
        %1789 = vmatpush1.msra.mxu0 %v566
        %1790 = vmatprep.subr.mxu0 0.0
        %1791 = vmatpush1.msra.mxu0 %v567
        %1792 = vmatprep.subr.mxu0 0.0
        %1793 = vmatpush1.msra.mxu0 %v568
        %1794 = vmatprep.subr.mxu0 0.0
        %1795 = vmatpush1.msra.mxu0 %v569
        %1796 = vmatprep.subr.mxu0 0.0
        %1797 = vmatpush1.msra.mxu0 %v570
        %1798 = vmatprep.subr.mxu0 0.0
        %1799 = vmatpush1.msra.mxu0 %v571
        %1800 = vmatprep.subr.mxu0 0.0
        %1801 = vmatpush1.msra.mxu0 %v572
        %1802 = vmatprep.subr.mxu0 0.0
        %1803 = vmatpush1.msra.mxu0 0.0
        %1804 = vmatprep.subr.mxu0 0.0
        %1805 = vmatpush1.msra.mxu0 0.0
        %1806 = vmatprep.subr.mxu0 0.0
        %1807 = vmatpush1.msra.mxu0 0.0
        %1808 = vmatprep.subr.mxu0 0.0
        %1809 = vmatpush1.msra.mxu0 0.0
        %1810 = vmatprep.subr.mxu0 0.0
        %1811 = vmatpush1.msra.mxu0 0.0
        %1812 = vmatprep.subr.mxu0 0.0
        %1813 = vmatpush1.msra.mxu0 0.0
        %1814 = vmatprep.subr.mxu0 0.0
        %1815 = vmatpush1.msra.mxu0 0.0
        %1816 = vmatprep.subr.mxu0 0.0
        %1817 = vmatpush1.msra.mxu0 0.0
        %1818 = vmatprep.subr.mxu0 0.0
        %1819 = vmatpush1.msra.mxu0 0.0
        %1820 = vmatprep.subr.mxu0 0.0
        %1821 = vmatpush1.msra.mxu0 0.0
        %1822 = vmatprep.subr.mxu0 0.0
        %1823 = vmatpush1.msra.mxu0 0.0
        %1824 = vmatprep.subr.mxu0 0.0
        %1825 = vmatpush1.msra.mxu0 0.0
        %1826 = vmatprep.subr.mxu0 0.0
        %1827 = vmatpush1.msra.mxu0 0.0
        %1828 = vmatprep.subr.mxu0 0.0
        %1829 = vmatpush1.msra.mxu0 0.0
        %1830 = vmatprep.subr.mxu0 0.0
        %1831 = vmatpush1.msra.mxu0 0.0
        %1832 = vmatprep.subr.mxu0 0.0
        %1833 = vmatpush1.msra.mxu0 0.0
        %1834 = vmatprep.mubr.f32.mxu0 0.0
        %1835 = vmatmul.mubr.f32.gmra.mrb[0].mxu0 %v1769
        %v1836 = vpop.f32.mrb[0].mxu0
        %v1837 = vadd.f32 %v610, %v1836
        %v1838 = vpop.f32.mrb[0].mxu0
        %1839 = vdwg.mxu0
        %v1840 = vtanh.pop %v1837
        %1841 = vmatprep.subr.mxu0 0.0
        %1842 = vmatpush1.msra.mxu0 %v589
        %1843 = vmatprep.subr.mxu0 0.0
        %1844 = vmatpush1.msra.mxu0 %v590
        %1845 = vmatprep.subr.mxu0 0.0
        %1846 = vmatpush1.msra.mxu0 %v591
        %1847 = vmatprep.subr.mxu0 0.0
        %1848 = vmatpush1.msra.mxu0 %v592
        %1849 = vmatprep.subr.mxu0 0.0
        %1850 = vmatpush1.msra.mxu0 %v593
        %1851 = vmatprep.subr.mxu0 0.0
        %1852 = vmatpush1.msra.mxu0 %v594
        %1853 = vmatprep.subr.mxu0 0.0
        %1854 = vmatpush1.msra.mxu0 %v595
        %1855 = vmatprep.subr.mxu0 0.0
        %1856 = vmatpush1.msra.mxu0 %v596
        %1857 = vmatprep.subr.mxu0 0.0
        %1858 = vmatpush1.msra.mxu0 %v597
        %1859 = vmatprep.subr.mxu0 0.0
        %1860 = vmatpush1.msra.mxu0 %v598
        %1861 = vmatprep.subr.mxu0 0.0
        %1862 = vmatpush1.msra.mxu0 %v599
        %1863 = vmatprep.subr.mxu0 0.0
        %1864 = vmatpush1.msra.mxu0 %v600
        %1865 = vmatprep.subr.mxu0 0.0
        %1866 = vmatpush1.msra.mxu0 %v601
        %1867 = vmatprep.subr.mxu0 0.0
        %1868 = vmatpush1.msra.mxu0 %v602
        %1869 = vmatprep.subr.mxu0 0.0
        %1870 = vmatpush1.msra.mxu0 %v603
        %1871 = vmatprep.subr.mxu0 0.0
        %1872 = vmatpush1.msra.mxu0 %v604
        %1873 = vmatprep.subr.mxu0 0.0
        %1874 = vmatpush1.msra.mxu0 0.0
        %1875 = vmatprep.subr.mxu0 0.0
        %1876 = vmatpush1.msra.mxu0 0.0
        %1877 = vmatprep.subr.mxu0 0.0
        %1878 = vmatpush1.msra.mxu0 0.0
        %1879 = vmatprep.subr.mxu0 0.0
        %1880 = vmatpush1.msra.mxu0 0.0
        %1881 = vmatprep.subr.mxu0 0.0
        %1882 = vmatpush1.msra.mxu0 0.0
        %1883 = vmatprep.subr.mxu0 0.0
        %1884 = vmatpush1.msra.mxu0 0.0
        %1885 = vmatprep.subr.mxu0 0.0
        %1886 = vmatpush1.msra.mxu0 0.0
        %1887 = vmatprep.subr.mxu0 0.0
        %1888 = vmatpush1.msra.mxu0 0.0
        %1889 = vmatprep.subr.mxu0 0.0
        %1890 = vmatpush1.msra.mxu0 0.0
        %1891 = vmatprep.subr.mxu0 0.0
        %1892 = vmatpush1.msra.mxu0 0.0
        %1893 = vmatprep.subr.mxu0 0.0
        %1894 = vmatpush1.msra.mxu0 0.0
        %1895 = vmatprep.subr.mxu0 0.0
        %1896 = vmatpush1.msra.mxu0 0.0
        %1897 = vmatprep.subr.mxu0 0.0
        %1898 = vmatpush1.msra.mxu0 0.0
        %1899 = vmatprep.subr.mxu0 0.0
        %1900 = vmatpush1.msra.mxu0 0.0
        %1901 = vmatprep.subr.mxu0 0.0
        %1902 = vmatpush1.msra.mxu0 0.0
        %1903 = vmatprep.subr.mxu0 0.0
        %1904 = vmatpush1.msra.mxu0 0.0
        %1905 = vmatprep.mubr.f32.mxu0 0.0
        %1906 = vmatmul.mubr.f32.gmra.mrb[0].mxu0 %v1840
        %v1907 = vpop.f32.mrb[0].mxu0
        %v1908 = vadd.f32 0.0, %v1907
        %v1909 = vpop.f32.mrb[0].mxu0
        %1910 = vdwg.mxu0
        %v1911 = vadd.f32 %v1687, %v1908
        %v1912 = vadd.f32 %v1911, %v624
        %1913 = vmatprep.subr.mxu0 0.0
        %1914 = vmatpush1.msra.mxu0 %v573
        %1915 = vmatprep.subr.mxu0 0.0
        %1916 = vmatpush1.msra.mxu0 %v574
        %1917 = vmatprep.subr.mxu0 0.0
        %1918 = vmatpush1.msra.mxu0 %v575
        %1919 = vmatprep.subr.mxu0 0.0
        %1920 = vmatpush1.msra.mxu0 %v576
        %1921 = vmatprep.subr.mxu0 0.0
        %1922 = vmatpush1.msra.mxu0 %v577
        %1923 = vmatprep.subr.mxu0 0.0
        %1924 = vmatpush1.msra.mxu0 %v578
        %1925 = vmatprep.subr.mxu0 0.0
        %1926 = vmatpush1.msra.mxu0 %v579
        %1927 = vmatprep.subr.mxu0 0.0
        %1928 = vmatpush1.msra.mxu0 %v580
        %1929 = vmatprep.subr.mxu0 0.0
        %1930 = vmatpush1.msra.mxu0 %v581
        %1931 = vmatprep.subr.mxu0 0.0
        %1932 = vmatpush1.msra.mxu0 %v582
        %1933 = vmatprep.subr.mxu0 0.0
        %1934 = vmatpush1.msra.mxu0 %v583
        %1935 = vmatprep.subr.mxu0 0.0
        %1936 = vmatpush1.msra.mxu0 %v584
        %1937 = vmatprep.subr.mxu0 0.0
        %1938 = vmatpush1.msra.mxu0 %v585
        %1939 = vmatprep.subr.mxu0 0.0
        %1940 = vmatpush1.msra.mxu0 %v586
        %1941 = vmatprep.subr.mxu0 0.0
        %1942 = vmatpush1.msra.mxu0 %v587
        %1943 = vmatprep.subr.mxu0 0.0
        %1944 = vmatpush1.msra.mxu0 %v588
        %1945 = vmatprep.subr.mxu0 0.0
        %1946 = vmatpush1.msra.mxu0 0.0
        %1947 = vmatprep.subr.mxu0 0.0
        %1948 = vmatpush1.msra.mxu0 0.0
        %1949 = vmatprep.subr.mxu0 0.0
        %1950 = vmatpush1.msra.mxu0 0.0
        %1951 = vmatprep.subr.mxu0 0.0
        %1952 = vmatpush1.msra.mxu0 0.0
        %1953 = vmatprep.subr.mxu0 0.0
        %1954 = vmatpush1.msra.mxu0 0.0
        %1955 = vmatprep.subr.mxu0 0.0
        %1956 = vmatpush1.msra.mxu0 0.0
        %1957 = vmatprep.subr.mxu0 0.0
        %1958 = vmatpush1.msra.mxu0 0.0
        %1959 = vmatprep.subr.mxu0 0.0
        %1960 = vmatpush1.msra.mxu0 0.0
        %1961 = vmatprep.subr.mxu0 0.0
        %1962 = vmatpush1.msra.mxu0 0.0
        %1963 = vmatprep.subr.mxu0 0.0
        %1964 = vmatpush1.msra.mxu0 0.0
        %1965 = vmatprep.subr.mxu0 0.0
        %1966 = vmatpush1.msra.mxu0 0.0
        %1967 = vmatprep.subr.mxu0 0.0
        %1968 = vmatpush1.msra.mxu0 0.0
        %1969 = vmatprep.subr.mxu0 0.0
        %1970 = vmatpush1.msra.mxu0 0.0
        %1971 = vmatprep.subr.mxu0 0.0
        %1972 = vmatpush1.msra.mxu0 0.0
        %1973 = vmatprep.subr.mxu0 0.0
        %1974 = vmatpush1.msra.mxu0 0.0
        %1975 = vmatprep.subr.mxu0 0.0
        %1976 = vmatpush1.msra.mxu0 0.0
        %1977 = vmatprep.mubr.f32.mxu0 0.0
        %1978 = vmatmul.mubr.f32.gmra.mrb[0].mxu0 %v1840
        %v1979 = vpop.f32.mrb[0].mxu0
        %v1980 = vadd.f32 0.0, %v1979
        %v1981 = vpop.f32.mrb[0].mxu0
        %1982 = vdwg.mxu0
        %v1983 = vadd.f32 %v1759, %v1980
        %v1984 = vadd.f32 %v1983, %v617
        %v1985 = vmul.f32 %v1984, 2.2675737e-05
        %s1986 = sadd.s32 %s636, 5
        %s1987 = scalar_lea.vmem %s388, %s1986
        %1988 = vst.msk [vmem:[%s1987] sm:$0x1] %vm862, %v1985
        %v1989 = vlaneseq
        %v1990 = vshrl.u32 %v1989, 7
        %v1991 = vsub.s32 6, %v1990
        %v1992 = vrot.slane %v638, %v1991
        %v1993 = vadd.f32 %v1912, %v1992
        %v1994 = vtanh.pop %v1993
        %1995 = vmatprep.subr.mxu0 0.0
        %1996 = vmatpush1.msra.mxu0 %v557
        %1997 = vmatprep.subr.mxu0 0.0
        %1998 = vmatpush1.msra.mxu0 %v558
        %1999 = vmatprep.subr.mxu0 0.0
        %2000 = vmatpush1.msra.mxu0 %v559
        %2001 = vmatprep.subr.mxu0 0.0
        %2002 = vmatpush1.msra.mxu0 %v560
        %2003 = vmatprep.subr.mxu0 0.0
        %2004 = vmatpush1.msra.mxu0 %v561
        %2005 = vmatprep.subr.mxu0 0.0
        %2006 = vmatpush1.msra.mxu0 %v562
        %2007 = vmatprep.subr.mxu0 0.0
        %2008 = vmatpush1.msra.mxu0 %v563
        %2009 = vmatprep.subr.mxu0 0.0
        %2010 = vmatpush1.msra.mxu0 %v564
        %2011 = vmatprep.subr.mxu0 0.0
        %2012 = vmatpush1.msra.mxu0 %v565
        %2013 = vmatprep.subr.mxu0 0.0
        %2014 = vmatpush1.msra.mxu0 %v566
        %2015 = vmatprep.subr.mxu0 0.0
        %2016 = vmatpush1.msra.mxu0 %v567
        %2017 = vmatprep.subr.mxu0 0.0
        %2018 = vmatpush1.msra.mxu0 %v568
        %2019 = vmatprep.subr.mxu0 0.0
        %2020 = vmatpush1.msra.mxu0 %v569
        %2021 = vmatprep.subr.mxu0 0.0
        %2022 = vmatpush1.msra.mxu0 %v570
        %2023 = vmatprep.subr.mxu0 0.0
        %2024 = vmatpush1.msra.mxu0 %v571
        %2025 = vmatprep.subr.mxu0 0.0
        %2026 = vmatpush1.msra.mxu0 %v572
        %2027 = vmatprep.subr.mxu0 0.0
        %2028 = vmatpush1.msra.mxu0 0.0
        %2029 = vmatprep.subr.mxu0 0.0
        %2030 = vmatpush1.msra.mxu0 0.0
        %2031 = vmatprep.subr.mxu0 0.0
        %2032 = vmatpush1.msra.mxu0 0.0
        %2033 = vmatprep.subr.mxu0 0.0
        %2034 = vmatpush1.msra.mxu0 0.0
        %2035 = vmatprep.subr.mxu0 0.0
        %2036 = vmatpush1.msra.mxu0 0.0
        %2037 = vmatprep.subr.mxu0 0.0
        %2038 = vmatpush1.msra.mxu0 0.0
        %2039 = vmatprep.subr.mxu0 0.0
        %2040 = vmatpush1.msra.mxu0 0.0
        %2041 = vmatprep.subr.mxu0 0.0
        %2042 = vmatpush1.msra.mxu0 0.0
        %2043 = vmatprep.subr.mxu0 0.0
        %2044 = vmatpush1.msra.mxu0 0.0
        %2045 = vmatprep.subr.mxu0 0.0
        %2046 = vmatpush1.msra.mxu0 0.0
        %2047 = vmatprep.subr.mxu0 0.0
        %2048 = vmatpush1.msra.mxu0 0.0
        %2049 = vmatprep.subr.mxu0 0.0
        %2050 = vmatpush1.msra.mxu0 0.0
        %2051 = vmatprep.subr.mxu0 0.0
        %2052 = vmatpush1.msra.mxu0 0.0
        %2053 = vmatprep.subr.mxu0 0.0
        %2054 = vmatpush1.msra.mxu0 0.0
        %2055 = vmatprep.subr.mxu0 0.0
        %2056 = vmatpush1.msra.mxu0 0.0
        %2057 = vmatprep.subr.mxu0 0.0
        %2058 = vmatpush1.msra.mxu0 0.0
        %2059 = vmatprep.mubr.f32.mxu0 0.0
        %2060 = vmatmul.mubr.f32.gmra.mrb[0].mxu0 %v1994
        %v2061 = vpop.f32.mrb[0].mxu0
        %v2062 = vadd.f32 %v610, %v2061
        %v2063 = vpop.f32.mrb[0].mxu0
        %2064 = vdwg.mxu0
        %v2065 = vtanh.pop %v2062
        %2066 = vmatprep.subr.mxu0 0.0
        %2067 = vmatpush1.msra.mxu0 %v589
        %2068 = vmatprep.subr.mxu0 0.0
        %2069 = vmatpush1.msra.mxu0 %v590
        %2070 = vmatprep.subr.mxu0 0.0
        %2071 = vmatpush1.msra.mxu0 %v591
        %2072 = vmatprep.subr.mxu0 0.0
        %2073 = vmatpush1.msra.mxu0 %v592
        %2074 = vmatprep.subr.mxu0 0.0
        %2075 = vmatpush1.msra.mxu0 %v593
        %2076 = vmatprep.subr.mxu0 0.0
        %2077 = vmatpush1.msra.mxu0 %v594
        %2078 = vmatprep.subr.mxu0 0.0
        %2079 = vmatpush1.msra.mxu0 %v595
        %2080 = vmatprep.subr.mxu0 0.0
        %2081 = vmatpush1.msra.mxu0 %v596
        %2082 = vmatprep.subr.mxu0 0.0
        %2083 = vmatpush1.msra.mxu0 %v597
        %2084 = vmatprep.subr.mxu0 0.0
        %2085 = vmatpush1.msra.mxu0 %v598
        %2086 = vmatprep.subr.mxu0 0.0
        %2087 = vmatpush1.msra.mxu0 %v599
        %2088 = vmatprep.subr.mxu0 0.0
        %2089 = vmatpush1.msra.mxu0 %v600
        %2090 = vmatprep.subr.mxu0 0.0
        %2091 = vmatpush1.msra.mxu0 %v601
        %2092 = vmatprep.subr.mxu0 0.0
        %2093 = vmatpush1.msra.mxu0 %v602
        %2094 = vmatprep.subr.mxu0 0.0
        %2095 = vmatpush1.msra.mxu0 %v603
        %2096 = vmatprep.subr.mxu0 0.0
        %2097 = vmatpush1.msra.mxu0 %v604
        %2098 = vmatprep.subr.mxu0 0.0
        %2099 = vmatpush1.msra.mxu0 0.0
        %2100 = vmatprep.subr.mxu0 0.0
        %2101 = vmatpush1.msra.mxu0 0.0
        %2102 = vmatprep.subr.mxu0 0.0
        %2103 = vmatpush1.msra.mxu0 0.0
        %2104 = vmatprep.subr.mxu0 0.0
        %2105 = vmatpush1.msra.mxu0 0.0
        %2106 = vmatprep.subr.mxu0 0.0
        %2107 = vmatpush1.msra.mxu0 0.0
        %2108 = vmatprep.subr.mxu0 0.0
        %2109 = vmatpush1.msra.mxu0 0.0
        %2110 = vmatprep.subr.mxu0 0.0
        %2111 = vmatpush1.msra.mxu0 0.0
        %2112 = vmatprep.subr.mxu0 0.0
        %2113 = vmatpush1.msra.mxu0 0.0
        %2114 = vmatprep.subr.mxu0 0.0
        %2115 = vmatpush1.msra.mxu0 0.0
        %2116 = vmatprep.subr.mxu0 0.0
        %2117 = vmatpush1.msra.mxu0 0.0
        %2118 = vmatprep.subr.mxu0 0.0
        %2119 = vmatpush1.msra.mxu0 0.0
        %2120 = vmatprep.subr.mxu0 0.0
        %2121 = vmatpush1.msra.mxu0 0.0
        %2122 = vmatprep.subr.mxu0 0.0
        %2123 = vmatpush1.msra.mxu0 0.0
        %2124 = vmatprep.subr.mxu0 0.0
        %2125 = vmatpush1.msra.mxu0 0.0
        %2126 = vmatprep.subr.mxu0 0.0
        %2127 = vmatpush1.msra.mxu0 0.0
        %2128 = vmatprep.subr.mxu0 0.0
        %2129 = vmatpush1.msra.mxu0 0.0
        %2130 = vmatprep.mubr.f32.mxu0 0.0
        %2131 = vmatmul.mubr.f32.gmra.mrb[0].mxu0 %v2065
        %v2132 = vpop.f32.mrb[0].mxu0
        %v2133 = vadd.f32 0.0, %v2132
        %v2134 = vpop.f32.mrb[0].mxu0
        %2135 = vdwg.mxu0
        %v2136 = vadd.f32 %v1912, %v2133
        %v2137 = vadd.f32 %v2136, %v624
        %2138 = vmatprep.subr.mxu0 0.0
        %2139 = vmatpush1.msra.mxu0 %v573
        %2140 = vmatprep.subr.mxu0 0.0
        %2141 = vmatpush1.msra.mxu0 %v574
        %2142 = vmatprep.subr.mxu0 0.0
        %2143 = vmatpush1.msra.mxu0 %v575
        %2144 = vmatprep.subr.mxu0 0.0
        %2145 = vmatpush1.msra.mxu0 %v576
        %2146 = vmatprep.subr.mxu0 0.0
        %2147 = vmatpush1.msra.mxu0 %v577
        %2148 = vmatprep.subr.mxu0 0.0
        %2149 = vmatpush1.msra.mxu0 %v578
        %2150 = vmatprep.subr.mxu0 0.0
        %2151 = vmatpush1.msra.mxu0 %v579
        %2152 = vmatprep.subr.mxu0 0.0
        %2153 = vmatpush1.msra.mxu0 %v580
        %2154 = vmatprep.subr.mxu0 0.0
        %2155 = vmatpush1.msra.mxu0 %v581
        %2156 = vmatprep.subr.mxu0 0.0
        %2157 = vmatpush1.msra.mxu0 %v582
        %2158 = vmatprep.subr.mxu0 0.0
        %2159 = vmatpush1.msra.mxu0 %v583
        %2160 = vmatprep.subr.mxu0 0.0
        %2161 = vmatpush1.msra.mxu0 %v584
        %2162 = vmatprep.subr.mxu0 0.0
        %2163 = vmatpush1.msra.mxu0 %v585
        %2164 = vmatprep.subr.mxu0 0.0
        %2165 = vmatpush1.msra.mxu0 %v586
        %2166 = vmatprep.subr.mxu0 0.0
        %2167 = vmatpush1.msra.mxu0 %v587
        %2168 = vmatprep.subr.mxu0 0.0
        %2169 = vmatpush1.msra.mxu0 %v588
        %2170 = vmatprep.subr.mxu0 0.0
        %2171 = vmatpush1.msra.mxu0 0.0
        %2172 = vmatprep.subr.mxu0 0.0
        %2173 = vmatpush1.msra.mxu0 0.0
        %2174 = vmatprep.subr.mxu0 0.0
        %2175 = vmatpush1.msra.mxu0 0.0
        %2176 = vmatprep.subr.mxu0 0.0
        %2177 = vmatpush1.msra.mxu0 0.0
        %2178 = vmatprep.subr.mxu0 0.0
        %2179 = vmatpush1.msra.mxu0 0.0
        %2180 = vmatprep.subr.mxu0 0.0
        %2181 = vmatpush1.msra.mxu0 0.0
        %2182 = vmatprep.subr.mxu0 0.0
        %2183 = vmatpush1.msra.mxu0 0.0
        %2184 = vmatprep.subr.mxu0 0.0
        %2185 = vmatpush1.msra.mxu0 0.0
        %2186 = vmatprep.subr.mxu0 0.0
        %2187 = vmatpush1.msra.mxu0 0.0
        %2188 = vmatprep.subr.mxu0 0.0
        %2189 = vmatpush1.msra.mxu0 0.0
        %2190 = vmatprep.subr.mxu0 0.0
        %2191 = vmatpush1.msra.mxu0 0.0
        %2192 = vmatprep.subr.mxu0 0.0
        %2193 = vmatpush1.msra.mxu0 0.0
        %2194 = vmatprep.subr.mxu0 0.0
        %2195 = vmatpush1.msra.mxu0 0.0
        %2196 = vmatprep.subr.mxu0 0.0
        %2197 = vmatpush1.msra.mxu0 0.0
        %2198 = vmatprep.subr.mxu0 0.0
        %2199 = vmatpush1.msra.mxu0 0.0
        %2200 = vmatprep.subr.mxu0 0.0
        %2201 = vmatpush1.msra.mxu0 0.0
        %2202 = vmatprep.mubr.f32.mxu0 0.0
        %2203 = vmatmul.mubr.f32.gmra.mrb[0].mxu0 %v2065
        %v2204 = vpop.f32.mrb[0].mxu0
        %v2205 = vadd.f32 0.0, %v2204
        %v2206 = vpop.f32.mrb[0].mxu0
        %2207 = vdwg.mxu0
        %v2208 = vadd.f32 %v1984, %v2205
        %v2209 = vadd.f32 %v2208, %v617
        %v2210 = vmul.f32 %v2209, 2.2675737e-05
        %s2211 = sadd.s32 %s636, 6
        %s2212 = scalar_lea.vmem %s388, %s2211
        %2213 = vst.msk [vmem:[%s2212] sm:$0x1] %vm862, %v2210
        %v2214 = vlaneseq
        %v2215 = vshrl.u32 %v2214, 7
        %v2216 = vsub.s32 7, %v2215
        %v2217 = vrot.slane %v638, %v2216
        %v2218 = vadd.f32 %v2137, %v2217
        %v2219 = vtanh.pop %v2218
        %2220 = vmatprep.subr.mxu0 0.0
        %2221 = vmatpush1.msra.mxu0 %v557
        %2222 = vmatprep.subr.mxu0 0.0
        %2223 = vmatpush1.msra.mxu0 %v558
        %2224 = vmatprep.subr.mxu0 0.0
        %2225 = vmatpush1.msra.mxu0 %v559
        %2226 = vmatprep.subr.mxu0 0.0
        %2227 = vmatpush1.msra.mxu0 %v560
        %2228 = vmatprep.subr.mxu0 0.0
        %2229 = vmatpush1.msra.mxu0 %v561
        %2230 = vmatprep.subr.mxu0 0.0
        %2231 = vmatpush1.msra.mxu0 %v562
        %2232 = vmatprep.subr.mxu0 0.0
        %2233 = vmatpush1.msra.mxu0 %v563
        %2234 = vmatprep.subr.mxu0 0.0
        %2235 = vmatpush1.msra.mxu0 %v564
        %2236 = vmatprep.subr.mxu0 0.0
        %2237 = vmatpush1.msra.mxu0 %v565
        %2238 = vmatprep.subr.mxu0 0.0
        %2239 = vmatpush1.msra.mxu0 %v566
        %2240 = vmatprep.subr.mxu0 0.0
        %2241 = vmatpush1.msra.mxu0 %v567
        %2242 = vmatprep.subr.mxu0 0.0
        %2243 = vmatpush1.msra.mxu0 %v568
        %2244 = vmatprep.subr.mxu0 0.0
        %2245 = vmatpush1.msra.mxu0 %v569
        %2246 = vmatprep.subr.mxu0 0.0
        %2247 = vmatpush1.msra.mxu0 %v570
        %2248 = vmatprep.subr.mxu0 0.0
        %2249 = vmatpush1.msra.mxu0 %v571
        %2250 = vmatprep.subr.mxu0 0.0
        %2251 = vmatpush1.msra.mxu0 %v572
        %2252 = vmatprep.subr.mxu0 0.0
        %2253 = vmatpush1.msra.mxu0 0.0
        %2254 = vmatprep.subr.mxu0 0.0
        %2255 = vmatpush1.msra.mxu0 0.0
        %2256 = vmatprep.subr.mxu0 0.0
        %2257 = vmatpush1.msra.mxu0 0.0
        %2258 = vmatprep.subr.mxu0 0.0
        %2259 = vmatpush1.msra.mxu0 0.0
        %2260 = vmatprep.subr.mxu0 0.0
        %2261 = vmatpush1.msra.mxu0 0.0
        %2262 = vmatprep.subr.mxu0 0.0
        %2263 = vmatpush1.msra.mxu0 0.0
        %2264 = vmatprep.subr.mxu0 0.0
        %2265 = vmatpush1.msra.mxu0 0.0
        %2266 = vmatprep.subr.mxu0 0.0
        %2267 = vmatpush1.msra.mxu0 0.0
        %2268 = vmatprep.subr.mxu0 0.0
        %2269 = vmatpush1.msra.mxu0 0.0
        %2270 = vmatprep.subr.mxu0 0.0
        %2271 = vmatpush1.msra.mxu0 0.0
        %2272 = vmatprep.subr.mxu0 0.0
        %2273 = vmatpush1.msra.mxu0 0.0
        %2274 = vmatprep.subr.mxu0 0.0
        %2275 = vmatpush1.msra.mxu0 0.0
        %2276 = vmatprep.subr.mxu0 0.0
        %2277 = vmatpush1.msra.mxu0 0.0
        %2278 = vmatprep.subr.mxu0 0.0
        %2279 = vmatpush1.msra.mxu0 0.0
        %2280 = vmatprep.subr.mxu0 0.0
        %2281 = vmatpush1.msra.mxu0 0.0
        %2282 = vmatprep.subr.mxu0 0.0
        %2283 = vmatpush1.msra.mxu0 0.0
        %2284 = vmatprep.mubr.f32.mxu0 0.0
        %2285 = vmatmul.mubr.f32.gmra.mrb[0].mxu0 %v2219
        %v2286 = vpop.f32.mrb[0].mxu0
        %v2287 = vadd.f32 %v610, %v2286
        %v2288 = vpop.f32.mrb[0].mxu0
        %2289 = vdwg.mxu0
        %v2290 = vtanh.pop %v2287
        %2291 = vmatprep.subr.mxu0 0.0
        %2292 = vmatpush1.msra.mxu0 %v589
        %2293 = vmatprep.subr.mxu0 0.0
        %2294 = vmatpush1.msra.mxu0 %v590
        %2295 = vmatprep.subr.mxu0 0.0
        %2296 = vmatpush1.msra.mxu0 %v591
        %2297 = vmatprep.subr.mxu0 0.0
        %2298 = vmatpush1.msra.mxu0 %v592
        %2299 = vmatprep.subr.mxu0 0.0
        %2300 = vmatpush1.msra.mxu0 %v593
        %2301 = vmatprep.subr.mxu0 0.0
        %2302 = vmatpush1.msra.mxu0 %v594
        %2303 = vmatprep.subr.mxu0 0.0
        %2304 = vmatpush1.msra.mxu0 %v595
        %2305 = vmatprep.subr.mxu0 0.0
        %2306 = vmatpush1.msra.mxu0 %v596
        %2307 = vmatprep.subr.mxu0 0.0
        %2308 = vmatpush1.msra.mxu0 %v597
        %2309 = vmatprep.subr.mxu0 0.0
        %2310 = vmatpush1.msra.mxu0 %v598
        %2311 = vmatprep.subr.mxu0 0.0
        %2312 = vmatpush1.msra.mxu0 %v599
        %2313 = vmatprep.subr.mxu0 0.0
        %2314 = vmatpush1.msra.mxu0 %v600
        %2315 = vmatprep.subr.mxu0 0.0
        %2316 = vmatpush1.msra.mxu0 %v601
        %2317 = vmatprep.subr.mxu0 0.0
        %2318 = vmatpush1.msra.mxu0 %v602
        %2319 = vmatprep.subr.mxu0 0.0
        %2320 = vmatpush1.msra.mxu0 %v603
        %2321 = vmatprep.subr.mxu0 0.0
        %2322 = vmatpush1.msra.mxu0 %v604
        %2323 = vmatprep.subr.mxu0 0.0
        %2324 = vmatpush1.msra.mxu0 0.0
        %2325 = vmatprep.subr.mxu0 0.0
        %2326 = vmatpush1.msra.mxu0 0.0
        %2327 = vmatprep.subr.mxu0 0.0
        %2328 = vmatpush1.msra.mxu0 0.0
        %2329 = vmatprep.subr.mxu0 0.0
        %2330 = vmatpush1.msra.mxu0 0.0
        %2331 = vmatprep.subr.mxu0 0.0
        %2332 = vmatpush1.msra.mxu0 0.0
        %2333 = vmatprep.subr.mxu0 0.0
        %2334 = vmatpush1.msra.mxu0 0.0
        %2335 = vmatprep.subr.mxu0 0.0
        %2336 = vmatpush1.msra.mxu0 0.0
        %2337 = vmatprep.subr.mxu0 0.0
        %2338 = vmatpush1.msra.mxu0 0.0
        %2339 = vmatprep.subr.mxu0 0.0
        %2340 = vmatpush1.msra.mxu0 0.0
        %2341 = vmatprep.subr.mxu0 0.0
        %2342 = vmatpush1.msra.mxu0 0.0
        %2343 = vmatprep.subr.mxu0 0.0
        %2344 = vmatpush1.msra.mxu0 0.0
        %2345 = vmatprep.subr.mxu0 0.0
        %2346 = vmatpush1.msra.mxu0 0.0
        %2347 = vmatprep.subr.mxu0 0.0
        %2348 = vmatpush1.msra.mxu0 0.0
        %2349 = vmatprep.subr.mxu0 0.0
        %2350 = vmatpush1.msra.mxu0 0.0
        %2351 = vmatprep.subr.mxu0 0.0
        %2352 = vmatpush1.msra.mxu0 0.0
        %2353 = vmatprep.subr.mxu0 0.0
        %2354 = vmatpush1.msra.mxu0 0.0
        %2355 = vmatprep.mubr.f32.mxu0 0.0
        %2356 = vmatmul.mubr.f32.gmra.mrb[0].mxu0 %v2290
        %v2357 = vpop.f32.mrb[0].mxu0
        %v2358 = vadd.f32 0.0, %v2357
        %v2359 = vpop.f32.mrb[0].mxu0
        %2360 = vdwg.mxu0
        %v2361 = vadd.f32 %v2137, %v2358
        %v2362 = vadd.f32 %v2361, %v624
        %2363 = vmatprep.subr.mxu0 0.0
        %2364 = vmatpush1.msra.mxu0 %v573
        %2365 = vmatprep.subr.mxu0 0.0
        %2366 = vmatpush1.msra.mxu0 %v574
        %2367 = vmatprep.subr.mxu0 0.0
        %2368 = vmatpush1.msra.mxu0 %v575
        %2369 = vmatprep.subr.mxu0 0.0
        %2370 = vmatpush1.msra.mxu0 %v576
        %2371 = vmatprep.subr.mxu0 0.0
        %2372 = vmatpush1.msra.mxu0 %v577
        %2373 = vmatprep.subr.mxu0 0.0
        %2374 = vmatpush1.msra.mxu0 %v578
        %2375 = vmatprep.subr.mxu0 0.0
        %2376 = vmatpush1.msra.mxu0 %v579
        %2377 = vmatprep.subr.mxu0 0.0
        %2378 = vmatpush1.msra.mxu0 %v580
        %2379 = vmatprep.subr.mxu0 0.0
        %2380 = vmatpush1.msra.mxu0 %v581
        %2381 = vmatprep.subr.mxu0 0.0
        %2382 = vmatpush1.msra.mxu0 %v582
        %2383 = vmatprep.subr.mxu0 0.0
        %2384 = vmatpush1.msra.mxu0 %v583
        %2385 = vmatprep.subr.mxu0 0.0
        %2386 = vmatpush1.msra.mxu0 %v584
        %2387 = vmatprep.subr.mxu0 0.0
        %2388 = vmatpush1.msra.mxu0 %v585
        %2389 = vmatprep.subr.mxu0 0.0
        %2390 = vmatpush1.msra.mxu0 %v586
        %2391 = vmatprep.subr.mxu0 0.0
        %2392 = vmatpush1.msra.mxu0 %v587
        %2393 = vmatprep.subr.mxu0 0.0
        %2394 = vmatpush1.msra.mxu0 %v588
        %2395 = vmatprep.subr.mxu0 0.0
        %2396 = vmatpush1.msra.mxu0 0.0
        %2397 = vmatprep.subr.mxu0 0.0
        %2398 = vmatpush1.msra.mxu0 0.0
        %2399 = vmatprep.subr.mxu0 0.0
        %2400 = vmatpush1.msra.mxu0 0.0
        %2401 = vmatprep.subr.mxu0 0.0
        %2402 = vmatpush1.msra.mxu0 0.0
        %2403 = vmatprep.subr.mxu0 0.0
        %2404 = vmatpush1.msra.mxu0 0.0
        %2405 = vmatprep.subr.mxu0 0.0
        %2406 = vmatpush1.msra.mxu0 0.0
        %2407 = vmatprep.subr.mxu0 0.0
        %2408 = vmatpush1.msra.mxu0 0.0
        %2409 = vmatprep.subr.mxu0 0.0
        %2410 = vmatpush1.msra.mxu0 0.0
        %2411 = vmatprep.subr.mxu0 0.0
        %2412 = vmatpush1.msra.mxu0 0.0
        %2413 = vmatprep.subr.mxu0 0.0
        %2414 = vmatpush1.msra.mxu0 0.0
        %2415 = vmatprep.subr.mxu0 0.0
        %2416 = vmatpush1.msra.mxu0 0.0
        %2417 = vmatprep.subr.mxu0 0.0
        %2418 = vmatpush1.msra.mxu0 0.0
        %2419 = vmatprep.subr.mxu0 0.0
        %2420 = vmatpush1.msra.mxu0 0.0
        %2421 = vmatprep.subr.mxu0 0.0
        %2422 = vmatpush1.msra.mxu0 0.0
        %2423 = vmatprep.subr.mxu0 0.0
        %2424 = vmatpush1.msra.mxu0 0.0
        %2425 = vmatprep.subr.mxu0 0.0
        %2426 = vmatpush1.msra.mxu0 0.0
        %2427 = vmatprep.mubr.f32.mxu0 0.0
        %2428 = vmatmul.mubr.f32.gmra.mrb[0].mxu0 %v2290
        %v2429 = vpop.f32.mrb[0].mxu0
        %v2430 = vadd.f32 0.0, %v2429
        %v2431 = vpop.f32.mrb[0].mxu0
        %2432 = vdwg.mxu0
        %v2433 = vadd.f32 %v2209, %v2430
        %v2434 = vadd.f32 %v2433, %v617
        %v2435 = vmul.f32 %v2434, 2.2675737e-05
        %s2436 = sadd.s32 %s636, 7
        %s2437 = scalar_lea.vmem %s388, %s2436
        %2438 = vst.msk [vmem:[%s2437] sm:$0x1] %vm862, %v2435
      $region73: #{tpu_custom_call.1} parent=63 // loop_footer
        %s633 = sadd.s32 1, %s629
      $region74: #{tpu_custom_call.1} parent=63 // loop_footer_branch
        %628 = sbr.rel target = $region70
      $region75: #{tpu_custom_call.1} parent=63 // loop_exit
        _
      %vm2439 = vcmask 130048
      %2440 = vst.msk [vmem:[#allocation2] sm:$0xff] %vm2439, %v634
      %2441 = vst [vmem:[#allocation3] sm:$0xff] %v635
      %s2442 = smul.u32 8, %s22
      %p2443 = scmp.lt.s32.totalorder %s2442, 31
      %s2444 = scalar_select %p2443, %s2442, 31
      %s2445 = smul.addr %s2444, 8
      %s2446 = scalar_lea.vmem %s11, %s2445
      // Predicated region
      $region76: #{tpu_custom_call.1} parent=63 // pred_check
        %p2447 = pneg %p276
      $region77: #{tpu_custom_call.1} parent=63 // pred_check_branch
        %2449 = sbr.rel (%p2447) target = $region79
      $region78: #{tpu_custom_call.1} parent=63 // pred_region
        %s2450 = smul.u32 8, %s22
      $region79: #{tpu_custom_call.1} parent=63 // pred_fallthru
        _
    $region64: #{tpu_custom_call.1} parent=5 // pred_fallthru
      _
    %p2451 = scmp.le.s32.totalorder 2, %s17
    // Predicated region
    $region80: #{tpu_custom_call.1} parent=5 // pred_check
      %p2452 = pneg %p2451
    $region81: #{tpu_custom_call.1} parent=5 // pred_check_branch
      %2454 = sbr.rel (%p2452) target = $region83
    $region82: #{tpu_custom_call.1} parent=5 // pred_region
      %s2455 = ssub.s32 %s17, 2
      // Predicated region
      $region84: #{tpu_custom_call.1} parent=82 // pred_check
        %p2456 = pneg %p282
      $region85: #{tpu_custom_call.1} parent=82 // pred_check_branch
        %2458 = sbr.rel (%p2456) target = $region87
      $region86: #{tpu_custom_call.1} parent=82 // pred_region
        %s2459 = smul.u32 8, %s23
        %p2460 = scmp.lt.s32.totalorder %s2459, 31
        %s2461 = scalar_select %p2460, %s2459, 31
        %s2462 = smul.addr %s2461, 8
        %s2463 = scalar_lea.vmem %s11, %s2462
      $region87: #{tpu_custom_call.1} parent=82 // pred_fallthru
        _
    $region83: #{tpu_custom_call.1} parent=5 // pred_fallthru
      _
  $region6: #{tpu_custom_call.1} parent=0 // loop_footer
    %s21 = sadd.s32 1, %s17
  $region7: #{tpu_custom_call.1} parent=0 // loop_footer_branch
    %16 = sbr.rel target = $region3
  $region8: #{tpu_custom_call.1} parent=0 // loop_exit
    _

</llo_original>
